<compile_context>
chip_gen: v6e
topology: v6e:2x2x1
jax: 0.10.0
libtpu: 0.0.40
codegen_flags: <defaults>
</compile_context>

<pallas_src>
import functools
import math

import jax
import jax.numpy as jnp
from jax.experimental import pallas as pl
from jax.experimental.pallas import tpu as pltpu


# ---------------------------------------------------------------------------
# Fused Pallas kernel
# ---------------------------------------------------------------------------
def _dqn_fused_kernel(p1_ref, w1_ref, b1_ref, w2_ref, b2_ref,
                      wh_ref, bh_ref, wq_ref, bq_ref, bsum_ref,
                      o_ref, h1w_ref, h2_ref, feat_ref,
                      *, B, S2, KK, C1, C2, log):
    f32 = jnp.float32
    G = S2 * B                                   # conv2 output rows, ordered (s, b)

    # --- conv1: ONE (KK*G, 128) @ (128, C1) MXU matmul + ONE ReLU -------------
    h1 = jnp.maximum(
        jnp.dot(p1_ref[...], w1_ref[...], preferred_element_type=f32)
        + b1_ref[...], 0.0)                       # (KK*G, C1), rows ordered (k, s, b)

    # --- pack per-(kh,kw) blocks along lanes so conv2 is one K=KK*C1 matmul ---
    # 25 sublane-aligned register slices -> cheap masked lane-offset stores
    # (each 32-wide block sits inside a single 128-lane tile).
    for k in range(KK):
        h1w_ref[:, k * C1:(k + 1) * C1] = h1[k * G:(k + 1) * G, :]

    # --- conv2: ONE (G, 800) @ (800, C2) matmul (MXU accumulates over K) ------
    h2_ref[...] = jnp.maximum(
        jnp.dot(h1w_ref[...], w2_ref[...], preferred_element_type=f32)
        + b2_ref[...], 0.0)                       # (G, C2), rows (s, b)

    # --- flatten conv features per batch row, feature order (s, c2) -----------
    for s in range(S2):
        feat_ref[:, s * C2:(s + 1) * C2] = h2_ref[s * B:(s + 1) * B, :]

    # --- noisy hv || ha heads N-stacked to 2*hidden lanes: ONE K=256 matmul ---
    hvha = jnp.maximum(
        jnp.dot(feat_ref[...], wh_ref[...], preferred_element_type=f32)
        + bh_ref[...], 0.0)                       # (B, 2*hidden): [hv | ha]

    # --- value + all advantages + dueling combine: ONE lane-dense matmul ------
    # wq/bq already encode q_i = v + a_i - mean_j(a_j); pad lanes carry -1e9.
    z = (jnp.dot(hvha, wq_ref[...], preferred_element_type=f32)
         + bq_ref[...])                           # (B, A*atoms_pad)

    # --- single-pass (log_)softmax over each 64-lane action block -------------
    # The row-global max is an equally valid per-block stabiliser (softmax is
    # shift-invariant within a block); per-block sum + broadcast is one tiny
    # matmul with the block-indicator matrix.  Pad lanes exp to exactly 0.
    m = jnp.max(z, axis=1, keepdims=True)
    e = jnp.exp(z - m)
    s_blk = jnp.dot(e, bsum_ref[...], preferred_element_type=f32)
    if log:
        o_ref[...] = (z - m) - jnp.log(s_blk)
    else:
        o_ref[...] = e * pl.reciprocal(s_blk, approx=True)


# ---------------------------------------------------------------------------
# Plain-JAX glue on the INPUT only: fused im2col for conv1 patches, grouped by
# conv2 output position.  Row order is (k, s, b) with k = kh*5+kw the conv2
# kernel position and s = po*ow2+qo the conv2 output position; feature order is
# (c, u, v), zero-padded to a 128-lane multiple.  Conv1 outputs that conv2
# never reads (floor-dropped rows/cols) are simply not computed.
# TODO(synk): at training batch sizes move this im2col into the kernel's DMA
# (BlockSpec index_map / manual copies) instead of a separate XLA transpose.
# ---------------------------------------------------------------------------
def conv_patches(x):
    B, C, H, W = x.shape
    oh2, ow2 = (H // 5) // 5, (W // 5) // 5
    S2, K1 = oh2 * ow2, C * 25
    Kp = ((K1 + 127) // 128) * 128
    xc = x[:, :, : oh2 * 25, : ow2 * 25]
    xr = xc.reshape(B, C, oh2, 5, 5, ow2, 5, 5)    # b, c, po, kh, u, qo, kw, v
    p1 = xr.transpose(3, 6, 2, 5, 0, 1, 4, 7)      # kh, kw, po, qo, b, c, u, v
    p1 = p1.reshape(25 * S2 * B, K1)
    if Kp > K1:
        p1 = jnp.pad(p1, ((0, 0), (0, Kp - K1)))
    return p1, S2


# ---------------------------------------------------------------------------
# One-time weight preparation: pre-transpose / permute / N-stack / fold the
# dueling combine, pad the conv1 contraction to a lane multiple.
# ---------------------------------------------------------------------------
def prepare_kernel_params(p, history_length, hidden_size, atoms, action_space, S2,
                          neg_pad=-1e9):
    C = history_length
    K1 = C * 25
    Kp = ((K1 + 127) // 128) * 128
    atoms_pad = ((atoms + 63) // 64) * 64

    # conv1: (32, C, 5, 5) -> (Kp, 32), rows ordered (c, u, v), zero-padded.
    w1 = p["w1"].reshape(32, K1).T
    w1 = jnp.pad(w1, ((0, Kp - K1), (0, 0)))
    b1 = p["b1"].reshape(1, 32)

    # conv2 as one K = 25*32 contraction: rows ordered (k=(kh,kw), c1).
    w2 = p["w2"].transpose(2, 3, 1, 0).reshape(25 * 32, 64)
    b2 = p["b2"].reshape(1, 64)

    # hv || ha noisy heads stacked along N (fills a 128-lane tile); rows are
    # re-permuted from PyTorch's flatten order f = c2*S2 + s to ours (s, c2).
    def head_rows(w):
        return (w.reshape(hidden_size, 64, S2).transpose(2, 1, 0)
                 .reshape(S2 * 64, hidden_size))
    wh = jnp.concatenate([head_rows(p["w_hv"]), head_rows(p["w_ha"])], axis=1)
    bh = jnp.concatenate([p["b_hv"], p["b_ha"]]).reshape(1, 2 * hidden_size)

    # Value + advantage + dueling combine folded into ONE lane-dense matrix:
    #   q_i = hv@wzv^T + bzv + ha@(wza_i - mean_j wza_j)^T + (bza_i - mean_j bza_j)
    # Column block i (width atoms_pad): rows [0, hidden) multiply hv, rows
    # [hidden, 2*hidden) multiply ha; pad columns get zero weights and a -1e9
    # bias so their exp is exactly 0 and they never influence max/sum.
    wzvT = p["w_zv"].T                                           # (hidden, atoms)
    wza = p["w_za"].reshape(action_space, atoms, hidden_size)    # (A, atoms, hidden)
    wza_c = wza - jnp.mean(wza, axis=0, keepdims=True)
    bza = p["b_za"].reshape(action_space, atoms)
    bq_blk = p["b_zv"][None, :] + bza - jnp.mean(bza, axis=0, keepdims=True)
    pad = atoms_pad - atoms
    w_cols, b_cols = [], []
    for i in range(action_space):
        blk = jnp.concatenate([wzvT, wza_c[i].T], axis=0)        # (2*hidden, atoms)
        w_cols.append(jnp.pad(blk, ((0, 0), (0, pad))))
        b_cols.append(jnp.pad(bq_blk[i], (0, pad), constant_values=neg_pad))
    wq = jnp.concatenate(w_cols, axis=1)                         # (2*hidden, A*atoms_pad)
    bq = jnp.concatenate(b_cols).reshape(1, action_space * atoms_pad)

    # Block-indicator matrix: one tiny matmul does per-action sum + broadcast.
    lane = jnp.arange(action_space * atoms_pad)
    bsum = (lane[:, None] // atoms_pad == lane[None, :] // atoms_pad).astype(jnp.float32)

    return dict(w1=w1, b1=b1, w2=w2, b2=b2, wh=wh, bh=bh, wq=wq, bq=bq, bsum=bsum)


# ---------------------------------------------------------------------------
# Forward pass: one pallas_call (plus the input im2col and a trivial slice)
# ---------------------------------------------------------------------------
@functools.partial(jax.jit, static_argnames=("action_space", "atoms", "log"))
def dqn_forward(x, prep, *, action_space, atoms, log=False):
    B = x.shape[0]
    atoms_pad = ((atoms + 63) // 64) * 64
    p1, S2 = conv_patches(x)
    # NOTE(v7x / training batches): add grid=(B // batch_tile,) over the batch
    # dim with dimension_semantics=("parallel",) so both TensorCores work, cast
    # weights/activations to bf16 (re-validate at ~1e-2 tol), and size the p1
    # tile for the 64 MiB VMEM (2x double-buffered tiles + ~0.7 MB of resident
    # weights).  At B=2 a single un-gridded f32 launch is latency-optimal.
    kernel = functools.partial(_dqn_fused_kernel, B=B, S2=S2, KK=25,
                               C1=32, C2=64, log=log)
    q_pad = pl.pallas_call(
        kernel,
        out_shape=jax.ShapeDtypeStruct((B, action_space * atoms_pad), jnp.float32),
        in_specs=[pl.BlockSpec(memory_space=pltpu.MemorySpace.VMEM)] * 10,
        out_specs=pl.BlockSpec(memory_space=pltpu.MemorySpace.VMEM),
        scratch_shapes=[
            pltpu.VMEM((S2 * B, 25 * 32), jnp.float32),   # (k,c1)-major conv1 slab
            pltpu.VMEM((S2 * B, 64), jnp.float32),        # conv2 output, rows (s,b)
            pltpu.VMEM((B, S2 * 64), jnp.float32),        # flattened conv features
        ],
    )(p1, prep["w1"], prep["b1"], prep["w2"], prep["b2"],
      prep["wh"], prep["bh"], prep["wq"], prep["bq"], prep["bsum"])
    # Lane-dense (B, A*64) kernel output -> (B, A, atoms); tiny slice, no transpose.
    return q_pad.reshape(B, action_space, atoms_pad)[:, :, :atoms]


# ---------------------------------------------------------------------------
# Deterministic parameter construction (mirrors the PyTorch __init__ shapes;
# NoisyLinear training-mode effective weights: mu + sigma * eps).
# ---------------------------------------------------------------------------
def scale_noise(key, size):
    x = jax.random.normal(key, (size,), dtype=jnp.float32)
    return jnp.sign(x) * jnp.sqrt(jnp.abs(x))


def noisy_linear_params(key, in_f, out_f, std_init=0.5):
    k1, k2, k3, k4 = jax.random.split(key, 4)
    mu_range = 1.0 / math.sqrt(in_f)
    w_mu = jax.random.uniform(k1, (out_f, in_f), minval=-mu_range, maxval=mu_range)
    b_mu = jax.random.uniform(k2, (out_f,), minval=-mu_range, maxval=mu_range)
    w_sigma = jnp.full((out_f, in_f), std_init / math.sqrt(in_f), jnp.float32)
    b_sigma = jnp.full((out_f,), std_init / math.sqrt(out_f), jnp.float32)
    eps_in = scale_noise(k3, in_f)
    eps_out = scale_noise(k4, out_f)
    return w_mu + w_sigma * jnp.outer(eps_out, eps_in), b_mu + b_sigma * eps_out


def conv_params(key, out_c, in_c, k):
    k1, k2 = jax.random.split(key)
    bound = 1.0 / math.sqrt(in_c * k * k)
    w = jax.random.uniform(k1, (out_c, in_c, k, k), minval=-bound, maxval=bound)
    b = jax.random.uniform(k2, (out_c,), minval=-bound, maxval=bound)
    return w, b


def make_params(key, history_length, hidden_size, atoms, action_space,
                conv_output_size, noisy_std=0.5):
    ks = jax.random.split(key, 6)
    p = {}
    p["w1"], p["b1"] = conv_params(ks[0], 32, history_length, 5)
    p["w2"], p["b2"] = conv_params(ks[1], 64, 32, 5)
    p["w_hv"], p["b_hv"] = noisy_linear_params(ks[2], conv_output_size, hidden_size, noisy_std)
    p["w_ha"], p["b_ha"] = noisy_linear_params(ks[3], conv_output_size, hidden_size, noisy_std)
    p["w_zv"], p["b_zv"] = noisy_linear_params(ks[4], hidden_size, atoms, noisy_std)
    p["w_za"], p["b_za"] = noisy_linear_params(ks[5], hidden_size, action_space * atoms, noisy_std)
    return p


# ---------------------------------------------------------------------------
# Pure-JAX reference (PyTorch-equivalent math) for the correctness cross-check.
# ---------------------------------------------------------------------------
def im2col_patch(x_nchw, k):
    B, C, H, W = x_nchw.shape
    oh, ow = H // k, W // k
    x = x_nchw[:, :, : oh * k, : ow * k]
    x = x.reshape(B, C, oh, k, ow, k).transpose(0, 2, 4, 1, 3, 5)
    return x.reshape(B * oh * ow, C * k * k), oh, ow


def dqn_forward_ref(x_nchw, p, action_space, atoms, log=False):
    B = x_nchw.shape[0]
    patches1, oh1, ow1 = im2col_patch(x_nchw, 5)
    h1 = jnp.maximum(patches1 @ p["w1"].reshape(32, -1).T + p["b1"], 0.0)
    h1 = h1.reshape(B, oh1, ow1, 32).transpose(0, 3, 1, 2)
    patches2, oh2, ow2 = im2col_patch(h1, 5)
    h2 = jnp.maximum(patches2 @ p["w2"].reshape(64, -1).T + p["b2"], 0.0)
    feat = h2.reshape(B, oh2, ow2, 64).transpose(0, 3, 1, 2).reshape(B, -1)
    hv = jnp.maximum(feat @ p["w_hv"].T + p["b_hv"], 0.0)
    ha = jnp.maximum(feat @ p["w_ha"].T + p["b_ha"], 0.0)
    v = (hv @ p["w_zv"].T + p["b_zv"]).reshape(B, 1, atoms)
    a = (ha @ p["w_za"].T + p["b_za"]).reshape(B, action_space, atoms)
    q = v + a - a.mean(1, keepdims=True)
    return jax.nn.log_softmax(q, axis=2) if log else jax.nn.softmax(q, axis=2)


# ---------------------------------------------------------------------------
if __name__ == "__main__":
    # args: history_length=4, hidden_size=64, atoms=51, noisy_std=0.5,
    #       architecture='data-efficient', action_space=6, 64x64 Atari frames
    B, history_length, H, W = 2, 4, 64, 64
    hidden_size, atoms, action_space = 64, 51, 6
    oh2, ow2 = (H // 5) // 5, (W // 5) // 5
    S2 = oh2 * ow2
    conv_output_size = 64 * S2            # = 256, matches the PyTorch init probe

    key = jax.random.PRNGKey(0)
    kx, kp = jax.random.split(key)
    x = jax.random.normal(kx, (B, history_length, H, W), dtype=jnp.float32)
    params = make_params(kp, history_length, hidden_size, atoms, action_space,
                         conv_output_size)
    prep = prepare_kernel_params(params, history_length, hidden_size, atoms,
                                 action_space, S2)

    # softmax path
    q = dqn_forward(x, prep, action_space=action_space, atoms=atoms, log=False)
    q = jax.block_until_ready(q)
    assert q.shape == (B, action_space, atoms)
    q_ref = dqn_forward_ref(x, params, action_space, atoms, log=False)
    assert jnp.allclose(q, q_ref, rtol=2e-3, atol=2e-3), "softmax mismatch vs JAX reference"
    assert jnp.allclose(q.sum(axis=2), 1.0, atol=1e-2)

    # log_softmax path
    ql = dqn_forward(x, prep, action_space=action_space, atoms=atoms, log=True)
    ql = jax.block_until_ready(ql)
    ql_ref = dqn_forward_ref(x, params, action_space, atoms, log=True)
    assert jnp.allclose(ql, ql_ref, rtol=2e-3, atol=2e-3), "log_softmax mismatch vs JAX reference"

    print("KERNEL_OK")
</pallas_src>

<mosaic_0001>
module attributes {stable_mosaic.version = 11 : i64} {
  func.func @_dqn_fused_kernel(%arg0: memref<200x128xf32, #tpu.memory_space<vmem>>, %arg1: memref<128x32xf32, #tpu.memory_space<vmem>>, %arg2: memref<1x32xf32, #tpu.memory_space<vmem>>, %arg3: memref<800x64xf32, #tpu.memory_space<vmem>>, %arg4: memref<1x64xf32, #tpu.memory_space<vmem>>, %arg5: memref<256x128xf32, #tpu.memory_space<vmem>>, %arg6: memref<1x128xf32, #tpu.memory_space<vmem>>, %arg7: memref<128x384xf32, #tpu.memory_space<vmem>>, %arg8: memref<1x384xf32, #tpu.memory_space<vmem>>, %arg9: memref<384x384xf32, #tpu.memory_space<vmem>>, %arg10: memref<2x384xf32, #tpu.memory_space<vmem>>, %arg11: memref<8x800xf32, #tpu.memory_space<vmem>>, %arg12: memref<8x64xf32, #tpu.memory_space<vmem>>, %arg13: memref<2x256xf32, #tpu.memory_space<vmem>>) attributes {dimension_semantics = [], scalar_prefetch = 0 : i64, scratch_operands = 3 : i64, tpu.core_type = #tpu.core_type<tc>} {
    %c0 = arith.constant 0 : index
    %c0_0 = arith.constant 0 : index
    %0 = vector.load %arg0[%c0, %c0_0] : memref<200x128xf32, #tpu.memory_space<vmem>>, vector<200x128xf32>
    %c0_1 = arith.constant 0 : index
    %c0_2 = arith.constant 0 : index
    %1 = vector.load %arg1[%c0_1, %c0_2] : memref<128x32xf32, #tpu.memory_space<vmem>>, vector<128x32xf32>
    %cst = arith.constant dense<0.000000e+00> : vector<200x32xf32>
    %2 = tpu.matmul %0, %1, %cst {dimension_numbers = #tpu.dot_dimension_numbers<[1], [0], [0], [1], [0, 0, 1, 1], [], []>} : vector<200x128xf32>, vector<128x32xf32>, vector<200x32xf32> -> vector<200x32xf32>
    %c0_3 = arith.constant 0 : index
    %c0_4 = arith.constant 0 : index
    %3 = vector.load %arg2[%c0_3, %c0_4] : memref<1x32xf32, #tpu.memory_space<vmem>>, vector<1x32xf32>
    %4 = vector.broadcast %3 : vector<1x32xf32> to vector<200x32xf32>
    %5 = arith.addf %2, %4 : vector<200x32xf32>
    %cst_5 = arith.constant 0.000000e+00 : f32
    %6 = vector.broadcast %cst_5 : f32 to vector<200x32xf32>
    %7 = arith.maximumf %5, %6 : vector<200x32xf32>
    %8 = vector.extract_strided_slice %7 {offsets = [0, 0], sizes = [8, 32], strides = [1, 1]} : vector<200x32xf32> to vector<8x32xf32>
    %c0_6 = arith.constant 0 : index
    %c0_7 = arith.constant 0 : index
    %9 = vector.load %arg11[%c0_6, %c0_7] : memref<8x800xf32, #tpu.memory_space<vmem>>, vector<8x32xf32>
    tpu.vector_store %arg11[%c0_6, %c0_7], %8 {strides = array<i32>} : memref<8x800xf32, #tpu.memory_space<vmem>>, vector<8x32xf32>,
    %10 = vector.extract_strided_slice %7 {offsets = [8, 0], sizes = [8, 32], strides = [1, 1]} : vector<200x32xf32> to vector<8x32xf32>
    %c0_8 = arith.constant 0 : index
    %c32 = arith.constant 32 : index
    %11 = vector.load %arg11[%c0_8, %c32] : memref<8x800xf32, #tpu.memory_space<vmem>>, vector<8x32xf32>
    tpu.vector_store %arg11[%c0_8, %c32], %10 {strides = array<i32>} : memref<8x800xf32, #tpu.memory_space<vmem>>, vector<8x32xf32>,
    %12 = vector.extract_strided_slice %7 {offsets = [16, 0], sizes = [8, 32], strides = [1, 1]} : vector<200x32xf32> to vector<8x32xf32>
    %c0_9 = arith.constant 0 : index
    %c64 = arith.constant 64 : index
    %13 = vector.load %arg11[%c0_9, %c64] : memref<8x800xf32, #tpu.memory_space<vmem>>, vector<8x32xf32>
    tpu.vector_store %arg11[%c0_9, %c64], %12 {strides = array<i32>} : memref<8x800xf32, #tpu.memory_space<vmem>>, vector<8x32xf32>,
    %14 = vector.extract_strided_slice %7 {offsets = [24, 0], sizes = [8, 32], strides = [1, 1]} : vector<200x32xf32> to vector<8x32xf32>
    %c0_10 = arith.constant 0 : index
    %c96 = arith.constant 96 : index
    %15 = vector.load %arg11[%c0_10, %c96] : memref<8x800xf32, #tpu.memory_space<vmem>>, vector<8x32xf32>
    tpu.vector_store %arg11[%c0_10, %c96], %14 {strides = array<i32>} : memref<8x800xf32, #tpu.memory_space<vmem>>, vector<8x32xf32>,
    %16 = vector.extract_strided_slice %7 {offsets = [32, 0], sizes = [8, 32], strides = [1, 1]} : vector<200x32xf32> to vector<8x32xf32>
    %c0_11 = arith.constant 0 : index
    %c128 = arith.constant 128 : index
    %17 = vector.load %arg11[%c0_11, %c128] : memref<8x800xf32, #tpu.memory_space<vmem>>, vector<8x32xf32>
    tpu.vector_store %arg11[%c0_11, %c128], %16 {strides = array<i32>} : memref<8x800xf32, #tpu.memory_space<vmem>>, vector<8x32xf32>,
    %18 = vector.extract_strided_slice %7 {offsets = [40, 0], sizes = [8, 32], strides = [1, 1]} : vector<200x32xf32> to vector<8x32xf32>
    %c0_12 = arith.constant 0 : index
    %c160 = arith.constant 160 : index
    %19 = vector.load %arg11[%c0_12, %c160] : memref<8x800xf32, #tpu.memory_space<vmem>>, vector<8x32xf32>
    tpu.vector_store %arg11[%c0_12, %c160], %18 {strides = array<i32>} : memref<8x800xf32, #tpu.memory_space<vmem>>, vector<8x32xf32>,
    %20 = vector.extract_strided_slice %7 {offsets = [48, 0], sizes = [8, 32], strides = [1, 1]} : vector<200x32xf32> to vector<8x32xf32>
    %c0_13 = arith.constant 0 : index
    %c192 = arith.constant 192 : index
    %21 = vector.load %arg11[%c0_13, %c192] : memref<8x800xf32, #tpu.memory_space<vmem>>, vector<8x32xf32>
    tpu.vector_store %arg11[%c0_13, %c192], %20 {strides = array<i32>} : memref<8x800xf32, #tpu.memory_space<vmem>>, vector<8x32xf32>,
    %22 = vector.extract_strided_slice %7 {offsets = [56, 0], sizes = [8, 32], strides = [1, 1]} : vector<200x32xf32> to vector<8x32xf32>
    %c0_14 = arith.constant 0 : index
    %c224 = arith.constant 224 : index
    %23 = vector.load %arg11[%c0_14, %c224] : memref<8x800xf32, #tpu.memory_space<vmem>>, vector<8x32xf32>
    tpu.vector_store %arg11[%c0_14, %c224], %22 {strides = array<i32>} : memref<8x800xf32, #tpu.memory_space<vmem>>, vector<8x32xf32>,
    %24 = vector.extract_strided_slice %7 {offsets = [64, 0], sizes = [8, 32], strides = [1, 1]} : vector<200x32xf32> to vector<8x32xf32>
    %c0_15 = arith.constant 0 : index
    %c256 = arith.constant 256 : index
    %25 = vector.load %arg11[%c0_15, %c256] : memref<8x800xf32, #tpu.memory_space<vmem>>, vector<8x32xf32>
    tpu.vector_store %arg11[%c0_15, %c256], %24 {strides = array<i32>} : memref<8x800xf32, #tpu.memory_space<vmem>>, vector<8x32xf32>,
    %26 = vector.extract_strided_slice %7 {offsets = [72, 0], sizes = [8, 32], strides = [1, 1]} : vector<200x32xf32> to vector<8x32xf32>
    %c0_16 = arith.constant 0 : index
    %c288 = arith.constant 288 : index
    %27 = vector.load %arg11[%c0_16, %c288] : memref<8x800xf32, #tpu.memory_space<vmem>>, vector<8x32xf32>
    tpu.vector_store %arg11[%c0_16, %c288], %26 {strides = array<i32>} : memref<8x800xf32, #tpu.memory_space<vmem>>, vector<8x32xf32>,
    %28 = vector.extract_strided_slice %7 {offsets = [80, 0], sizes = [8, 32], strides = [1, 1]} : vector<200x32xf32> to vector<8x32xf32>
    %c0_17 = arith.constant 0 : index
    %c320 = arith.constant 320 : index
    %29 = vector.load %arg11[%c0_17, %c320] : memref<8x800xf32, #tpu.memory_space<vmem>>, vector<8x32xf32>
    tpu.vector_store %arg11[%c0_17, %c320], %28 {strides = array<i32>} : memref<8x800xf32, #tpu.memory_space<vmem>>, vector<8x32xf32>,
    %30 = vector.extract_strided_slice %7 {offsets = [88, 0], sizes = [8, 32], strides = [1, 1]} : vector<200x32xf32> to vector<8x32xf32>
    %c0_18 = arith.constant 0 : index
    %c352 = arith.constant 352 : index
    %31 = vector.load %arg11[%c0_18, %c352] : memref<8x800xf32, #tpu.memory_space<vmem>>, vector<8x32xf32>
    tpu.vector_store %arg11[%c0_18, %c352], %30 {strides = array<i32>} : memref<8x800xf32, #tpu.memory_space<vmem>>, vector<8x32xf32>,
    %32 = vector.extract_strided_slice %7 {offsets = [96, 0], sizes = [8, 32], strides = [1, 1]} : vector<200x32xf32> to vector<8x32xf32>
    %c0_19 = arith.constant 0 : index
    %c384 = arith.constant 384 : index
    %33 = vector.load %arg11[%c0_19, %c384] : memref<8x800xf32, #tpu.memory_space<vmem>>, vector<8x32xf32>
    tpu.vector_store %arg11[%c0_19, %c384], %32 {strides = array<i32>} : memref<8x800xf32, #tpu.memory_space<vmem>>, vector<8x32xf32>,
    %34 = vector.extract_strided_slice %7 {offsets = [104, 0], sizes = [8, 32], strides = [1, 1]} : vector<200x32xf32> to vector<8x32xf32>
    %c0_20 = arith.constant 0 : index
    %c416 = arith.constant 416 : index
    %35 = vector.load %arg11[%c0_20, %c416] : memref<8x800xf32, #tpu.memory_space<vmem>>, vector<8x32xf32>
    tpu.vector_store %arg11[%c0_20, %c416], %34 {strides = array<i32>} : memref<8x800xf32, #tpu.memory_space<vmem>>, vector<8x32xf32>,
    %36 = vector.extract_strided_slice %7 {offsets = [112, 0], sizes = [8, 32], strides = [1, 1]} : vector<200x32xf32> to vector<8x32xf32>
    %c0_21 = arith.constant 0 : index
    %c448 = arith.constant 448 : index
    %37 = vector.load %arg11[%c0_21, %c448] : memref<8x800xf32, #tpu.memory_space<vmem>>, vector<8x32xf32>
    tpu.vector_store %arg11[%c0_21, %c448], %36 {strides = array<i32>} : memref<8x800xf32, #tpu.memory_space<vmem>>, vector<8x32xf32>,
    %38 = vector.extract_strided_slice %7 {offsets = [120, 0], sizes = [8, 32], strides = [1, 1]} : vector<200x32xf32> to vector<8x32xf32>
    %c0_22 = arith.constant 0 : index
    %c480 = arith.constant 480 : index
    %39 = vector.load %arg11[%c0_22, %c480] : memref<8x800xf32, #tpu.memory_space<vmem>>, vector<8x32xf32>
    tpu.vector_store %arg11[%c0_22, %c480], %38 {strides = array<i32>} : memref<8x800xf32, #tpu.memory_space<vmem>>, vector<8x32xf32>,
    %40 = vector.extract_strided_slice %7 {offsets = [128, 0], sizes = [8, 32], strides = [1, 1]} : vector<200x32xf32> to vector<8x32xf32>
    %c0_23 = arith.constant 0 : index
    %c512 = arith.constant 512 : index
    %41 = vector.load %arg11[%c0_23, %c512] : memref<8x800xf32, #tpu.memory_space<vmem>>, vector<8x32xf32>
    tpu.vector_store %arg11[%c0_23, %c512], %40 {strides = array<i32>} : memref<8x800xf32, #tpu.memory_space<vmem>>, vector<8x32xf32>,
    %42 = vector.extract_strided_slice %7 {offsets = [136, 0], sizes = [8, 32], strides = [1, 1]} : vector<200x32xf32> to vector<8x32xf32>
    %c0_24 = arith.constant 0 : index
    %c544 = arith.constant 544 : index
    %43 = vector.load %arg11[%c0_24, %c544] : memref<8x800xf32, #tpu.memory_space<vmem>>, vector<8x32xf32>
    tpu.vector_store %arg11[%c0_24, %c544], %42 {strides = array<i32>} : memref<8x800xf32, #tpu.memory_space<vmem>>, vector<8x32xf32>,
    %44 = vector.extract_strided_slice %7 {offsets = [144, 0], sizes = [8, 32], strides = [1, 1]} : vector<200x32xf32> to vector<8x32xf32>
    %c0_25 = arith.constant 0 : index
    %c576 = arith.constant 576 : index
    %45 = vector.load %arg11[%c0_25, %c576] : memref<8x800xf32, #tpu.memory_space<vmem>>, vector<8x32xf32>
    tpu.vector_store %arg11[%c0_25, %c576], %44 {strides = array<i32>} : memref<8x800xf32, #tpu.memory_space<vmem>>, vector<8x32xf32>,
    %46 = vector.extract_strided_slice %7 {offsets = [152, 0], sizes = [8, 32], strides = [1, 1]} : vector<200x32xf32> to vector<8x32xf32>
    %c0_26 = arith.constant 0 : index
    %c608 = arith.constant 608 : index
    %47 = vector.load %arg11[%c0_26, %c608] : memref<8x800xf32, #tpu.memory_space<vmem>>, vector<8x32xf32>
    tpu.vector_store %arg11[%c0_26, %c608], %46 {strides = array<i32>} : memref<8x800xf32, #tpu.memory_space<vmem>>, vector<8x32xf32>,
    %48 = vector.extract_strided_slice %7 {offsets = [160, 0], sizes = [8, 32], strides = [1, 1]} : vector<200x32xf32> to vector<8x32xf32>
    %c0_27 = arith.constant 0 : index
    %c640 = arith.constant 640 : index
    %49 = vector.load %arg11[%c0_27, %c640] : memref<8x800xf32, #tpu.memory_space<vmem>>, vector<8x32xf32>
    tpu.vector_store %arg11[%c0_27, %c640], %48 {strides = array<i32>} : memref<8x800xf32, #tpu.memory_space<vmem>>, vector<8x32xf32>,
    %50 = vector.extract_strided_slice %7 {offsets = [168, 0], sizes = [8, 32], strides = [1, 1]} : vector<200x32xf32> to vector<8x32xf32>
    %c0_28 = arith.constant 0 : index
    %c672 = arith.constant 672 : index
    %51 = vector.load %arg11[%c0_28, %c672] : memref<8x800xf32, #tpu.memory_space<vmem>>, vector<8x32xf32>
    tpu.vector_store %arg11[%c0_28, %c672], %50 {strides = array<i32>} : memref<8x800xf32, #tpu.memory_space<vmem>>, vector<8x32xf32>,
    %52 = vector.extract_strided_slice %7 {offsets = [176, 0], sizes = [8, 32], strides = [1, 1]} : vector<200x32xf32> to vector<8x32xf32>
    %c0_29 = arith.constant 0 : index
    %c704 = arith.constant 704 : index
    %53 = vector.load %arg11[%c0_29, %c704] : memref<8x800xf32, #tpu.memory_space<vmem>>, vector<8x32xf32>
    tpu.vector_store %arg11[%c0_29, %c704], %52 {strides = array<i32>} : memref<8x800xf32, #tpu.memory_space<vmem>>, vector<8x32xf32>,
    %54 = vector.extract_strided_slice %7 {offsets = [184, 0], sizes = [8, 32], strides = [1, 1]} : vector<200x32xf32> to vector<8x32xf32>
    %c0_30 = arith.constant 0 : index
    %c736 = arith.constant 736 : index
    %55 = vector.load %arg11[%c0_30, %c736] : memref<8x800xf32, #tpu.memory_space<vmem>>, vector<8x32xf32>
    tpu.vector_store %arg11[%c0_30, %c736], %54 {strides = array<i32>} : memref<8x800xf32, #tpu.memory_space<vmem>>, vector<8x32xf32>,
    %56 = vector.extract_strided_slice %7 {offsets = [192, 0], sizes = [8, 32], strides = [1, 1]} : vector<200x32xf32> to vector<8x32xf32>
    %c0_31 = arith.constant 0 : index
    %c768 = arith.constant 768 : index
    %57 = vector.load %arg11[%c0_31, %c768] : memref<8x800xf32, #tpu.memory_space<vmem>>, vector<8x32xf32>
    tpu.vector_store %arg11[%c0_31, %c768], %56 {strides = array<i32>} : memref<8x800xf32, #tpu.memory_space<vmem>>, vector<8x32xf32>,
    %c0_32 = arith.constant 0 : index
    %c0_33 = arith.constant 0 : index
    %58 = vector.load %arg11[%c0_32, %c0_33] : memref<8x800xf32, #tpu.memory_space<vmem>>, vector<8x800xf32>
    %c0_34 = arith.constant 0 : index
    %c0_35 = arith.constant 0 : index
    %59 = vector.load %arg3[%c0_34, %c0_35] : memref<800x64xf32, #tpu.memory_space<vmem>>, vector<800x64xf32>
    %cst_36 = arith.constant dense<0.000000e+00> : vector<8x64xf32>
    %60 = tpu.matmul %58, %59, %cst_36 {dimension_numbers = #tpu.dot_dimension_numbers<[1], [0], [0], [1], [0, 0, 1, 1], [], []>} : vector<8x800xf32>, vector<800x64xf32>, vector<8x64xf32> -> vector<8x64xf32>
    %c0_37 = arith.constant 0 : index
    %c0_38 = arith.constant 0 : index
    %61 = vector.load %arg4[%c0_37, %c0_38] : memref<1x64xf32, #tpu.memory_space<vmem>>, vector<1x64xf32>
    %62 = vector.broadcast %61 : vector<1x64xf32> to vector<8x64xf32>
    %63 = arith.addf %60, %62 : vector<8x64xf32>
    %cst_39 = arith.constant 0.000000e+00 : f32
    %64 = vector.broadcast %cst_39 : f32 to vector<8x64xf32>
    %65 = arith.maximumf %63, %64 : vector<8x64xf32>
    %c0_40 = arith.constant 0 : index
    %c0_41 = arith.constant 0 : index
    %66 = vector.load %arg12[%c0_40, %c0_41] : memref<8x64xf32, #tpu.memory_space<vmem>>, vector<8x64xf32>
    tpu.vector_store %arg12[%c0_40, %c0_41], %65 {strides = array<i32>} : memref<8x64xf32, #tpu.memory_space<vmem>>, vector<8x64xf32>,
    %c0_42 = arith.constant 0 : index
    %c0_43 = arith.constant 0 : index
    %67 = vector.load %arg12[%c0_42, %c0_43] : memref<8x64xf32, #tpu.memory_space<vmem>>, vector<2x64xf32>
    %c0_44 = arith.constant 0 : index
    %c0_45 = arith.constant 0 : index
    %68 = vector.load %arg13[%c0_44, %c0_45] : memref<2x256xf32, #tpu.memory_space<vmem>>, vector<2x64xf32>
    tpu.vector_store %arg13[%c0_44, %c0_45], %67 {strides = array<i32>} : memref<2x256xf32, #tpu.memory_space<vmem>>, vector<2x64xf32>,
    %c2 = arith.constant 2 : index
    %c0_46 = arith.constant 0 : index
    %69 = vector.load %arg12[%c2, %c0_46] : memref<8x64xf32, #tpu.memory_space<vmem>>, vector<2x64xf32>
    %c0_47 = arith.constant 0 : index
    %c64_48 = arith.constant 64 : index
    %70 = vector.load %arg13[%c0_47, %c64_48] : memref<2x256xf32, #tpu.memory_space<vmem>>, vector<2x64xf32>
    tpu.vector_store %arg13[%c0_47, %c64_48], %69 {strides = array<i32>} : memref<2x256xf32, #tpu.memory_space<vmem>>, vector<2x64xf32>,
    %c4 = arith.constant 4 : index
    %c0_49 = arith.constant 0 : index
    %71 = vector.load %arg12[%c4, %c0_49] : memref<8x64xf32, #tpu.memory_space<vmem>>, vector<2x64xf32>
    %c0_50 = arith.constant 0 : index
    %c128_51 = arith.constant 128 : index
    %72 = vector.load %arg13[%c0_50, %c128_51] : memref<2x256xf32, #tpu.memory_space<vmem>>, vector<2x64xf32>
    tpu.vector_store %arg13[%c0_50, %c128_51], %71 {strides = array<i32>} : memref<2x256xf32, #tpu.memory_space<vmem>>, vector<2x64xf32>,
    %c6 = arith.constant 6 : index
    %c0_52 = arith.constant 0 : index
    %73 = vector.load %arg12[%c6, %c0_52] : memref<8x64xf32, #tpu.memory_space<vmem>>, vector<2x64xf32>
    %c0_53 = arith.constant 0 : index
    %c192_54 = arith.constant 192 : index
    %74 = vector.load %arg13[%c0_53, %c192_54] : memref<2x256xf32, #tpu.memory_space<vmem>>, vector<2x64xf32>
    tpu.vector_store %arg13[%c0_53, %c192_54], %73 {strides = array<i32>} : memref<2x256xf32, #tpu.memory_space<vmem>>, vector<2x64xf32>,
    %c0_55 = arith.constant 0 : index
    %c0_56 = arith.constant 0 : index
    %75 = vector.load %arg13[%c0_55, %c0_56] : memref<2x256xf32, #tpu.memory_space<vmem>>, vector<2x256xf32>
    %c0_57 = arith.constant 0 : index
    %c0_58 = arith.constant 0 : index
    %76 = vector.load %arg5[%c0_57, %c0_58] : memref<256x128xf32, #tpu.memory_space<vmem>>, vector<256x128xf32>
    %cst_59 = arith.constant dense<0.000000e+00> : vector<2x128xf32>
    %77 = tpu.matmul %75, %76, %cst_59 {dimension_numbers = #tpu.dot_dimension_numbers<[1], [0], [0], [1], [0, 0, 1, 1], [], []>} : vector<2x256xf32>, vector<256x128xf32>, vector<2x128xf32> -> vector<2x128xf32>
    %c0_60 = arith.constant 0 : index
    %c0_61 = arith.constant 0 : index
    %78 = vector.load %arg6[%c0_60, %c0_61] : memref<1x128xf32, #tpu.memory_space<vmem>>, vector<1x128xf32>
    %79 = vector.broadcast %78 : vector<1x128xf32> to vector<2x128xf32>
    %80 = arith.addf %77, %79 : vector<2x128xf32>
    %cst_62 = arith.constant 0.000000e+00 : f32
    %81 = vector.broadcast %cst_62 : f32 to vector<2x128xf32>
    %82 = arith.maximumf %80, %81 : vector<2x128xf32>
    %c0_63 = arith.constant 0 : index
    %c0_64 = arith.constant 0 : index
    %83 = vector.load %arg7[%c0_63, %c0_64] : memref<128x384xf32, #tpu.memory_space<vmem>>, vector<128x384xf32>
    %cst_65 = arith.constant dense<0.000000e+00> : vector<2x384xf32>
    %84 = tpu.matmul %82, %83, %cst_65 {dimension_numbers = #tpu.dot_dimension_numbers<[1], [0], [0], [1], [0, 0, 1, 1], [], []>} : vector<2x128xf32>, vector<128x384xf32>, vector<2x384xf32> -> vector<2x384xf32>
    %c0_66 = arith.constant 0 : index
    %c0_67 = arith.constant 0 : index
    %85 = vector.load %arg8[%c0_66, %c0_67] : memref<1x384xf32, #tpu.memory_space<vmem>>, vector<1x384xf32>
    %86 = vector.broadcast %85 : vector<1x384xf32> to vector<2x384xf32>
    %87 = arith.addf %84, %86 : vector<2x384xf32>
    %cst_68 = arith.constant dense<0xFF800000> : vector<2xf32>
    %88 = vector.multi_reduction <maximumf>, %87, %cst_68 [1] : vector<2x384xf32> to vector<2xf32>
    %89 = vector.shape_cast %88 : vector<2xf32> to vector<2x1xf32>
    %90 = vector.broadcast %89 : vector<2x1xf32> to vector<2x384xf32>
    %91 = arith.subf %87, %90 : vector<2x384xf32>
    %92 = math.exp %91 : vector<2x384xf32>
    %c0_69 = arith.constant 0 : index
    %c0_70 = arith.constant 0 : index
    %93 = vector.load %arg9[%c0_69, %c0_70] : memref<384x384xf32, #tpu.memory_space<vmem>>, vector<384x384xf32>
    %cst_71 = arith.constant dense<0.000000e+00> : vector<2x384xf32>
    %94 = tpu.matmul %92, %93, %cst_71 {dimension_numbers = #tpu.dot_dimension_numbers<[1], [0], [0], [1], [0, 0, 1, 1], [], []>} : vector<2x384xf32>, vector<384x384xf32>, vector<2x384xf32> -> vector<2x384xf32>
    %95 = tpu.reciprocal %94 {approx = true} : vector<2x384xf32> -> vector<2x384xf32>
    %96 = arith.mulf %92, %95 : vector<2x384xf32>
    %c0_72 = arith.constant 0 : index
    %c0_73 = arith.constant 0 : index
    %97 = vector.load %arg10[%c0_72, %c0_73] : memref<2x384xf32, #tpu.memory_space<vmem>>, vector<2x384xf32>
    tpu.vector_store %arg10[%c0_72, %c0_73], %96 {strides = array<i32>} : memref<2x384xf32, #tpu.memory_space<vmem>>, vector<2x384xf32>,
    return
  }
}

</mosaic_0001>

<llo_original>
// kernel: dqn_forward.1
$region0: #{dqn_forward.1}
  #allocation0 [shape = 'u32[]', space=smem, size = 0x4, offset = 0x4, fixed_abs, tag = 'smem constant byte address 0x4 - core index']
  #allocation1 [shape = 'u32[144,128]{1,0:T(1,128)}', space=vmem, size = 0x12000, scoped, tag = 'internal scratch']
  #allocation2 [shape = 'f32[8,800]{1,0:T(8,128)}', space=vmem, size = 0x7000, scoped, tag = 'scratch operand']
  #allocation3 [shape = 'f32[8,64]{1,0:T(8,128)}', space=vmem, size = 0x1000, scoped, tag = 'scratch operand']
  #allocation4 [shape = 'f32[2,256]{1,0:T(2,128)}', space=vmem, size = 0x800, scoped, tag = 'scratch operand']
  %s0 = inlined_call_operand.vmem [shape: f32[200,128], index: 0, kind: input, shape index: {}]
  %s1 = inlined_call_operand.vmem [shape: f32[128,32], index: 1, kind: input, shape index: {}]
  %s2 = inlined_call_operand.vmem [shape: f32[1,32], index: 2, kind: input, shape index: {}]
  %s3 = inlined_call_operand.vmem [shape: f32[800,64], index: 3, kind: input, shape index: {}]
  %s4 = inlined_call_operand.vmem [shape: f32[1,64], index: 4, kind: input, shape index: {}]
  %s5 = inlined_call_operand.vmem [shape: f32[256,128], index: 5, kind: input, shape index: {}]
  %s6 = inlined_call_operand.vmem [shape: f32[1,128], index: 6, kind: input, shape index: {}]
  %s7 = inlined_call_operand.vmem [shape: f32[128,384], index: 7, kind: input, shape index: {}]
  %s8 = inlined_call_operand.vmem [shape: f32[1,384], index: 8, kind: input, shape index: {}]
  %s9 = inlined_call_operand.vmem [shape: f32[384,384], index: 9, kind: input, shape index: {}]
  %s10 = inlined_call_operand.vmem [shape: f32[2,384], index: 10, kind: output, shape index: {}]
  %s11 = sld [smem:[#allocation0]]
  $region50: #{dqn_forward.1} parent=0
    _
  %s13 = ssub.s32 1, %s11
  %s14 = scalar_select 0, %s13, %s11
  // Predicated region
  $region2: #{dqn_forward.1} parent=0 // pred_check
    _
  $region3: #{dqn_forward.1} parent=0 // pred_check_branch
    %16 = sbr.rel (0) target = $region5
  $region4: #{dqn_forward.1} parent=0 // pred_region
    _
  $region5: #{dqn_forward.1} parent=0 // pred_fallthru
    _
  // Predicated region
  $region6: #{dqn_forward.1} parent=0 // pred_check
    _
  $region7: #{dqn_forward.1} parent=0 // pred_check_branch
    %18 = sbr.rel (0) target = $region9
  $region8: #{dqn_forward.1} parent=0 // pred_region
    _
  $region9: #{dqn_forward.1} parent=0 // pred_fallthru
    _
  // Predicated region
  $region10: #{dqn_forward.1} parent=0 // pred_check
    _
  $region11: #{dqn_forward.1} parent=0 // pred_check_branch
    %20 = sbr.rel (0) target = $region13
  $region12: #{dqn_forward.1} parent=0 // pred_region
    _
  $region13: #{dqn_forward.1} parent=0 // pred_fallthru
    _
  // Predicated region
  $region14: #{dqn_forward.1} parent=0 // pred_check
    _
  $region15: #{dqn_forward.1} parent=0 // pred_check_branch
    %22 = sbr.rel (0) target = $region17
  $region16: #{dqn_forward.1} parent=0 // pred_region
    _
  $region17: #{dqn_forward.1} parent=0 // pred_fallthru
    _
  // Predicated region
  $region18: #{dqn_forward.1} parent=0 // pred_check
    _
  $region19: #{dqn_forward.1} parent=0 // pred_check_branch
    %24 = sbr.rel (0) target = $region21
  $region20: #{dqn_forward.1} parent=0 // pred_region
    _
  $region21: #{dqn_forward.1} parent=0 // pred_fallthru
    _
  // Predicated region
  $region22: #{dqn_forward.1} parent=0 // pred_check
    _
  $region23: #{dqn_forward.1} parent=0 // pred_check_branch
    %26 = sbr.rel (0) target = $region25
  $region24: #{dqn_forward.1} parent=0 // pred_region
    _
  $region25: #{dqn_forward.1} parent=0 // pred_fallthru
    _
  // Predicated region
  $region26: #{dqn_forward.1} parent=0 // pred_check
    _
  $region27: #{dqn_forward.1} parent=0 // pred_check_branch
    %28 = sbr.rel (0) target = $region29
  $region28: #{dqn_forward.1} parent=0 // pred_region
    _
  $region29: #{dqn_forward.1} parent=0 // pred_fallthru
    _
  // Predicated region
  $region30: #{dqn_forward.1} parent=0 // pred_check
    _
  $region31: #{dqn_forward.1} parent=0 // pred_check_branch
    %30 = sbr.rel (0) target = $region33
  $region32: #{dqn_forward.1} parent=0 // pred_region
    _
  $region33: #{dqn_forward.1} parent=0 // pred_fallthru
    _
  // Predicated region
  $region34: #{dqn_forward.1} parent=0 // pred_check
    _
  $region35: #{dqn_forward.1} parent=0 // pred_check_branch
    %32 = sbr.rel (0) target = $region37
  $region36: #{dqn_forward.1} parent=0 // pred_region
    _
  $region37: #{dqn_forward.1} parent=0 // pred_fallthru
    _
  // Predicated region
  $region38: #{dqn_forward.1} parent=0 // pred_check
    _
  $region39: #{dqn_forward.1} parent=0 // pred_check_branch
    %34 = sbr.rel (0) target = $region41
  $region40: #{dqn_forward.1} parent=0 // pred_region
    _
  $region41: #{dqn_forward.1} parent=0 // pred_fallthru
    _
  %v35 = vld [vmem:[%s0] sm:$0xff]
  %v36 = vld [vmem:[%s0 + $0x8] sm:$0xff]
  %v37 = vld [vmem:[%s0 + $0x10] sm:$0xff]
  %v38 = vld [vmem:[%s0 + $0x18] sm:$0xff]
  %v39 = vld [vmem:[%s0 + $0x20] sm:$0xff]
  %v40 = vld [vmem:[%s0 + $0x28] sm:$0xff]
  %v41 = vld [vmem:[%s0 + $0x30] sm:$0xff]
  %v42 = vld [vmem:[%s0 + $0x38] sm:$0xff]
  %v43 = vld [vmem:[%s0 + $0x40] sm:$0xff]
  %v44 = vld [vmem:[%s0 + $0x48] sm:$0xff]
  %v45 = vld [vmem:[%s0 + $0x50] sm:$0xff]
  %v46 = vld [vmem:[%s0 + $0x58] sm:$0xff]
  %v47 = vld [vmem:[%s0 + $0x60] sm:$0xff]
  %v48 = vld [vmem:[%s0 + $0x68] sm:$0xff]
  %v49 = vld [vmem:[%s0 + $0x70] sm:$0xff]
  %v50 = vld [vmem:[%s0 + $0x78] sm:$0xff]
  %v51 = vld [vmem:[%s0 + $0x80] sm:$0xff]
  %v52 = vld [vmem:[%s0 + $0x88] sm:$0xff]
  %v53 = vld [vmem:[%s0 + $0x90] sm:$0xff]
  %v54 = vld [vmem:[%s0 + $0x98] sm:$0xff]
  %v55 = vld [vmem:[%s0 + $0xa0] sm:$0xff]
  %v56 = vld [vmem:[%s0 + $0xa8] sm:$0xff]
  %v57 = vld [vmem:[%s0 + $0xb0] sm:$0xff]
  %v58 = vld [vmem:[%s0 + $0xb8] sm:$0xff]
  %v59 = vld [vmem:[%s0 + $0xc0] sm:$0xff]
  %v60 = vld [vmem:[%s1] sm:$0xff]
  %v61 = vld [vmem:[%s1 + $0x8] sm:$0xff]
  %v62 = vld [vmem:[%s1 + $0x10] sm:$0xff]
  %v63 = vld [vmem:[%s1 + $0x18] sm:$0xff]
  %v64 = vld [vmem:[%s1 + $0x20] sm:$0xff]
  %v65 = vld [vmem:[%s1 + $0x28] sm:$0xff]
  %v66 = vld [vmem:[%s1 + $0x30] sm:$0xff]
  %v67 = vld [vmem:[%s1 + $0x38] sm:$0xff]
  %v68 = vld [vmem:[%s1 + $0x40] sm:$0xff]
  %v69 = vld [vmem:[%s1 + $0x48] sm:$0xff]
  %v70 = vld [vmem:[%s1 + $0x50] sm:$0xff]
  %v71 = vld [vmem:[%s1 + $0x58] sm:$0xff]
  %v72 = vld [vmem:[%s1 + $0x60] sm:$0xff]
  %v73 = vld [vmem:[%s1 + $0x68] sm:$0xff]
  %v74 = vld [vmem:[%s1 + $0x70] sm:$0xff]
  %v75 = vld [vmem:[%s1 + $0x78] sm:$0xff]
  %v76 = vld [vmem:[%s2] sm:$0x1]
  %v78 = vlaneseq
  %v79 = vshrl.u32 %v78, 7
  %v80 = vsub.s32 0, %v79
  %v81 = vrot.slane %v76, %v80
  %83 = vmatprep.subr.mxu0 0.0
  %84 = vmatpush1.msra.mxu0 %v75
  %85 = vmatprep.subr.mxu0 0.0
  %86 = vmatpush1.msra.mxu0 %v74
  %87 = vmatprep.subr.mxu0 0.0
  %88 = vmatpush1.msra.mxu0 %v73
  %89 = vmatprep.subr.mxu0 0.0
  %90 = vmatpush1.msra.mxu0 %v72
  %91 = vmatprep.subr.mxu0 0.0
  %92 = vmatpush1.msra.mxu0 %v71
  %93 = vmatprep.subr.mxu0 0.0
  %94 = vmatpush1.msra.mxu0 %v70
  %95 = vmatprep.subr.mxu0 0.0
  %96 = vmatpush1.msra.mxu0 %v69
  %97 = vmatprep.subr.mxu0 0.0
  %98 = vmatpush1.msra.mxu0 %v68
  %99 = vmatprep.subr.mxu0 0.0
  %100 = vmatpush1.msra.mxu0 %v67
  %101 = vmatprep.subr.mxu0 0.0
  %102 = vmatpush1.msra.mxu0 %v66
  %103 = vmatprep.subr.mxu0 0.0
  %104 = vmatpush1.msra.mxu0 %v65
  %105 = vmatprep.subr.mxu0 0.0
  %106 = vmatpush1.msra.mxu0 %v64
  %107 = vmatprep.subr.mxu0 0.0
  %108 = vmatpush1.msra.mxu0 %v63
  %109 = vmatprep.subr.mxu0 0.0
  %110 = vmatpush1.msra.mxu0 %v62
  %111 = vmatprep.subr.mxu0 0.0
  %112 = vmatpush1.msra.mxu0 %v61
  %113 = vmatprep.subr.mxu0 0.0
  %114 = vmatpush1.msra.mxu0 %v60
  %115 = vmatprep.subr.mxu0 0.0
  %116 = vmatpush2.msra.mxu0 0.0
  %117 = vmatprep.subr.mxu0 0.0
  %118 = vmatpush2.msra.mxu0 0.0
  %119 = vmatprep.subr.mxu0 0.0
  %120 = vmatpush2.msra.mxu0 0.0
  %121 = vmatprep.subr.mxu0 0.0
  %122 = vmatpush2.msra.mxu0 0.0
  %123 = vmatprep.subr.mxu0 0.0
  %124 = vmatpush2.msra.mxu0 0.0
  %125 = vmatprep.subr.mxu0 0.0
  %126 = vmatpush2.msra.mxu0 0.0
  %127 = vmatprep.subr.mxu0 0.0
  %128 = vmatpush2.msra.mxu0 0.0
  %129 = vmatprep.subr.mxu0 0.0
  %130 = vmatpush2.msra.mxu0 0.0
  %131 = vmatprep.subr.mxu0 0.0
  %132 = vmatpush2.msra.mxu0 0.0
  %133 = vmatprep.subr.mxu0 0.0
  %134 = vmatpush2.msra.mxu0 0.0
  %135 = vmatprep.subr.mxu0 0.0
  %136 = vmatpush2.msra.mxu0 0.0
  %137 = vmatprep.subr.mxu0 0.0
  %138 = vmatpush2.msra.mxu0 0.0
  %139 = vmatprep.subr.mxu0 0.0
  %140 = vmatpush2.msra.mxu0 0.0
  %141 = vmatprep.subr.mxu0 0.0
  %142 = vmatpush2.msra.mxu0 0.0
  %143 = vmatprep.subr.mxu0 0.0
  %144 = vmatpush2.msra.mxu0 0.0
  %145 = vmatprep.subr.mxu0 0.0
  %146 = vmatpush2.msra.mxu0 0.0
  %147 = vmatprep.mubr.f32.mxu0 0.0
  %148 = vmatmul.mubr.f32.gmra.mxu0 %v35
  %v149 = vpop.f32.mrf.mxu0
  %v150 = vadd.f32 %v81, %v149
  %v151 = vpop.f32.mrf.mxu0
  %152 = vmatprep.mubr.f32.mxu0 0.0
  %153 = vmatmul.mubr.f32.gmra.mxu0 %v36
  %v154 = vpop.f32.mrf.mxu0
  %v155 = vadd.f32 %v81, %v154
  %v156 = vpop.f32.mrf.mxu0
  %157 = vmatprep.mubr.f32.mxu0 0.0
  %158 = vmatmul.mubr.f32.gmra.mxu0 %v37
  %v159 = vpop.f32.mrf.mxu0
  %v160 = vadd.f32 %v81, %v159
  %v161 = vpop.f32.mrf.mxu0
  %162 = vmatprep.mubr.f32.mxu0 0.0
  %163 = vmatmul.mubr.f32.gmra.mxu0 %v38
  %v164 = vpop.f32.mrf.mxu0
  %v165 = vadd.f32 %v81, %v164
  %v166 = vpop.f32.mrf.mxu0
  %167 = vmatprep.mubr.f32.mxu0 0.0
  %168 = vmatmul.mubr.f32.gmra.mxu0 %v39
  %v169 = vpop.f32.mrf.mxu0
  %v170 = vadd.f32 %v81, %v169
  %v171 = vpop.f32.mrf.mxu0
  %172 = vmatprep.mubr.f32.mxu0 0.0
  %173 = vmatmul.mubr.f32.gmra.mxu0 %v40
  %v174 = vpop.f32.mrf.mxu0
  %v175 = vadd.f32 %v81, %v174
  %v176 = vpop.f32.mrf.mxu0
  %177 = vmatprep.mubr.f32.mxu0 0.0
  %178 = vmatmul.mubr.f32.gmra.mxu0 %v41
  %v179 = vpop.f32.mrf.mxu0
  %v180 = vadd.f32 %v81, %v179
  %v181 = vpop.f32.mrf.mxu0
  %182 = vmatprep.mubr.f32.mxu0 0.0
  %183 = vmatmul.mubr.f32.gmra.mxu0 %v42
  %v184 = vpop.f32.mrf.mxu0
  %v185 = vadd.f32 %v81, %v184
  %v186 = vpop.f32.mrf.mxu0
  %187 = vmatprep.mubr.f32.mxu0 0.0
  %188 = vmatmul.mubr.f32.gmra.mxu0 %v43
  %v189 = vpop.f32.mrf.mxu0
  %v190 = vadd.f32 %v81, %v189
  %v191 = vpop.f32.mrf.mxu0
  %192 = vmatprep.mubr.f32.mxu0 0.0
  %193 = vmatmul.mubr.f32.gmra.mxu0 %v44
  %v194 = vpop.f32.mrf.mxu0
  %v195 = vadd.f32 %v81, %v194
  %v196 = vpop.f32.mrf.mxu0
  %197 = vmatprep.mubr.f32.mxu0 0.0
  %198 = vmatmul.mubr.f32.gmra.mxu0 %v45
  %v199 = vpop.f32.mrf.mxu0
  %v200 = vadd.f32 %v81, %v199
  %v201 = vpop.f32.mrf.mxu0
  %202 = vmatprep.mubr.f32.mxu0 0.0
  %203 = vmatmul.mubr.f32.gmra.mxu0 %v46
  %v204 = vpop.f32.mrf.mxu0
  %v205 = vadd.f32 %v81, %v204
  %v206 = vpop.f32.mrf.mxu0
  %207 = vmatprep.mubr.f32.mxu0 0.0
  %208 = vmatmul.mubr.f32.gmra.mxu0 %v47
  %v209 = vpop.f32.mrf.mxu0
  %v210 = vadd.f32 %v81, %v209
  %v211 = vpop.f32.mrf.mxu0
  %212 = vmatprep.mubr.f32.mxu0 0.0
  %213 = vmatmul.mubr.f32.gmra.mxu0 %v48
  %v214 = vpop.f32.mrf.mxu0
  %v215 = vadd.f32 %v81, %v214
  %v216 = vpop.f32.mrf.mxu0
  %217 = vmatprep.mubr.f32.mxu0 0.0
  %218 = vmatmul.mubr.f32.gmra.mxu0 %v49
  %v219 = vpop.f32.mrf.mxu0
  %v220 = vadd.f32 %v81, %v219
  %v221 = vpop.f32.mrf.mxu0
  %222 = vmatprep.mubr.f32.mxu0 0.0
  %223 = vmatmul.mubr.f32.gmra.mxu0 %v50
  %v224 = vpop.f32.mrf.mxu0
  %v225 = vadd.f32 %v81, %v224
  %v226 = vpop.f32.mrf.mxu0
  %227 = vmatprep.mubr.f32.mxu0 0.0
  %228 = vmatmul.mubr.f32.gmra.mxu0 %v51
  %v229 = vpop.f32.mrf.mxu0
  %v230 = vadd.f32 %v81, %v229
  %v231 = vpop.f32.mrf.mxu0
  %232 = vmatprep.mubr.f32.mxu0 0.0
  %233 = vmatmul.mubr.f32.gmra.mxu0 %v52
  %v234 = vpop.f32.mrf.mxu0
  %v235 = vadd.f32 %v81, %v234
  %v236 = vpop.f32.mrf.mxu0
  %237 = vmatprep.mubr.f32.mxu0 0.0
  %238 = vmatmul.mubr.f32.gmra.mxu0 %v53
  %v239 = vpop.f32.mrf.mxu0
  %v240 = vadd.f32 %v81, %v239
  %v241 = vpop.f32.mrf.mxu0
  %242 = vmatprep.mubr.f32.mxu0 0.0
  %243 = vmatmul.mubr.f32.gmra.mxu0 %v54
  %v244 = vpop.f32.mrf.mxu0
  %v245 = vadd.f32 %v81, %v244
  %v246 = vpop.f32.mrf.mxu0
  %247 = vmatprep.mubr.f32.mxu0 0.0
  %248 = vmatmul.mubr.f32.gmra.mxu0 %v55
  %v249 = vpop.f32.mrf.mxu0
  %v250 = vadd.f32 %v81, %v249
  %v251 = vpop.f32.mrf.mxu0
  %252 = vmatprep.mubr.f32.mxu0 0.0
  %253 = vmatmul.mubr.f32.gmra.mxu0 %v56
  %v254 = vpop.f32.mrf.mxu0
  %v255 = vadd.f32 %v81, %v254
  %v256 = vpop.f32.mrf.mxu0
  %257 = vmatprep.mubr.f32.mxu0 0.0
  %258 = vmatmul.mubr.f32.gmra.mxu0 %v57
  %v259 = vpop.f32.mrf.mxu0
  %v260 = vadd.f32 %v81, %v259
  %v261 = vpop.f32.mrf.mxu0
  %262 = vmatprep.mubr.f32.mxu0 0.0
  %263 = vmatmul.mubr.f32.gmra.mxu0 %v58
  %v264 = vpop.f32.mrf.mxu0
  %v265 = vadd.f32 %v81, %v264
  %v266 = vpop.f32.mrf.mxu0
  %267 = vmatprep.mubr.f32.mxu0 0.0
  %268 = vmatmul.mubr.f32.gmra.mxu0 %v59
  %v269 = vpop.f32.mrf.mxu0
  %v270 = vadd.f32 %v81, %v269
  %v271 = vpop.f32.mrf.mxu0
  %272 = vdwg.mxu0
  %v273 = vmax.f32 %v150, 0.0
  %v274 = vmax.f32 %v155, 0.0
  %v275 = vmax.f32 %v160, 0.0
  %v276 = vmax.f32 %v165, 0.0
  %v277 = vmax.f32 %v170, 0.0
  %v278 = vmax.f32 %v175, 0.0
  %v279 = vmax.f32 %v180, 0.0
  %v280 = vmax.f32 %v185, 0.0
  %v281 = vmax.f32 %v190, 0.0
  %v282 = vmax.f32 %v195, 0.0
  %v283 = vmax.f32 %v200, 0.0
  %v284 = vmax.f32 %v205, 0.0
  %v285 = vmax.f32 %v210, 0.0
  %v286 = vmax.f32 %v215, 0.0
  %v287 = vmax.f32 %v220, 0.0
  %v288 = vmax.f32 %v225, 0.0
  %v289 = vmax.f32 %v230, 0.0
  %v290 = vmax.f32 %v235, 0.0
  %v291 = vmax.f32 %v240, 0.0
  %v292 = vmax.f32 %v245, 0.0
  %v293 = vmax.f32 %v250, 0.0
  %v294 = vmax.f32 %v255, 0.0
  %v295 = vmax.f32 %v260, 0.0
  %v296 = vmax.f32 %v265, 0.0
  %v297 = vmax.f32 %v270, 0.0
  %vm298 = vcmask 261120
  %299 = vst.msk [vmem:[#allocation2] sm:$0xff] %vm298, %v273
  %301 = vrot.lane.b32.xlu0 %v274, 32
  %v302 = vpop.permute.xlu0 %301
  %vm304 = vcmask 523520
  %305 = vst.msk [vmem:[#allocation2] sm:$0xff] %vm304, %v302
  %307 = vrot.lane.b32.xlu0 %v275, 64
  %v308 = vpop.permute.xlu0 %307
  %vm310 = vcmask 785920
  %311 = vst.msk [vmem:[#allocation2] sm:$0xff] %vm310, %v308
  %313 = vrot.lane.b32.xlu0 %v276, 96
  %v314 = vpop.permute.xlu0 %313
  %vm316 = vcmask 1048320
  %317 = vst.msk [vmem:[#allocation2] sm:$0xff] %vm316, %v314
  %318 = vst.msk [vmem:[#allocation2 + $0x8] sm:$0xff] %vm298, %v277
  %320 = vrot.lane.b32.xlu0 %v278, 32
  %v321 = vpop.permute.xlu0 %320
  %323 = vst.msk [vmem:[#allocation2 + $0x8] sm:$0xff] %vm304, %v321
  %325 = vrot.lane.b32.xlu0 %v279, 64
  %v326 = vpop.permute.xlu0 %325
  %328 = vst.msk [vmem:[#allocation2 + $0x8] sm:$0xff] %vm310, %v326
  %330 = vrot.lane.b32.xlu0 %v280, 96
  %v331 = vpop.permute.xlu0 %330
  %333 = vst.msk [vmem:[#allocation2 + $0x8] sm:$0xff] %vm316, %v331
  %334 = vst.msk [vmem:[#allocation2 + $0x10] sm:$0xff] %vm298, %v281
  %336 = vrot.lane.b32.xlu0 %v282, 32
  %v337 = vpop.permute.xlu0 %336
  %339 = vst.msk [vmem:[#allocation2 + $0x10] sm:$0xff] %vm304, %v337
  %341 = vrot.lane.b32.xlu0 %v283, 64
  %v342 = vpop.permute.xlu0 %341
  %344 = vst.msk [vmem:[#allocation2 + $0x10] sm:$0xff] %vm310, %v342
  %346 = vrot.lane.b32.xlu0 %v284, 96
  %v347 = vpop.permute.xlu0 %346
  %349 = vst.msk [vmem:[#allocation2 + $0x10] sm:$0xff] %vm316, %v347
  %350 = vst.msk [vmem:[#allocation2 + $0x18] sm:$0xff] %vm298, %v285
  %352 = vrot.lane.b32.xlu0 %v286, 32
  %v353 = vpop.permute.xlu0 %352
  %355 = vst.msk [vmem:[#allocation2 + $0x18] sm:$0xff] %vm304, %v353
  %357 = vrot.lane.b32.xlu0 %v287, 64
  %v358 = vpop.permute.xlu0 %357
  %360 = vst.msk [vmem:[#allocation2 + $0x18] sm:$0xff] %vm310, %v358
  %362 = vrot.lane.b32.xlu0 %v288, 96
  %v363 = vpop.permute.xlu0 %362
  %365 = vst.msk [vmem:[#allocation2 + $0x18] sm:$0xff] %vm316, %v363
  %366 = vst.msk [vmem:[#allocation2 + $0x20] sm:$0xff] %vm298, %v289
  %368 = vrot.lane.b32.xlu0 %v290, 32
  %v369 = vpop.permute.xlu0 %368
  %371 = vst.msk [vmem:[#allocation2 + $0x20] sm:$0xff] %vm304, %v369
  %373 = vrot.lane.b32.xlu0 %v291, 64
  %v374 = vpop.permute.xlu0 %373
  %376 = vst.msk [vmem:[#allocation2 + $0x20] sm:$0xff] %vm310, %v374
  %378 = vrot.lane.b32.xlu0 %v292, 96
  %v379 = vpop.permute.xlu0 %378
  %381 = vst.msk [vmem:[#allocation2 + $0x20] sm:$0xff] %vm316, %v379
  %382 = vst.msk [vmem:[#allocation2 + $0x28] sm:$0xff] %vm298, %v293
  %384 = vrot.lane.b32.xlu0 %v294, 32
  %v385 = vpop.permute.xlu0 %384
  %387 = vst.msk [vmem:[#allocation2 + $0x28] sm:$0xff] %vm304, %v385
  %389 = vrot.lane.b32.xlu0 %v295, 64
  %v390 = vpop.permute.xlu0 %389
  %392 = vst.msk [vmem:[#allocation2 + $0x28] sm:$0xff] %vm310, %v390
  %394 = vrot.lane.b32.xlu0 %v296, 96
  %v395 = vpop.permute.xlu0 %394
  %397 = vst.msk [vmem:[#allocation2 + $0x28] sm:$0xff] %vm316, %v395
  %398 = vst.msk [vmem:[#allocation2 + $0x30] sm:$0xff] %vm298, %v297
  %v399 = vld [vmem:[#allocation2] sm:$0xff]
  %v400 = vld [vmem:[#allocation2 + $0x8] sm:$0xff]
  %v401 = vld [vmem:[#allocation2 + $0x10] sm:$0xff]
  %v402 = vld [vmem:[#allocation2 + $0x18] sm:$0xff]
  %v403 = vld [vmem:[#allocation2 + $0x20] sm:$0xff]
  %v404 = vld [vmem:[#allocation2 + $0x28] sm:$0xff]
  %v405 = vld [vmem:[#allocation2 + $0x30] sm:$0xff]
  %v406 = vld [vmem:[%s3] sm:$0xff]
  %v407 = vld [vmem:[%s3 + $0x8] sm:$0xff]
  %v408 = vld [vmem:[%s3 + $0x10] sm:$0xff]
  %v409 = vld [vmem:[%s3 + $0x18] sm:$0xff]
  %v410 = vld [vmem:[%s3 + $0x20] sm:$0xff]
  %v411 = vld [vmem:[%s3 + $0x28] sm:$0xff]
  %v412 = vld [vmem:[%s3 + $0x30] sm:$0xff]
  %v413 = vld [vmem:[%s3 + $0x38] sm:$0xff]
  %v414 = vld [vmem:[%s3 + $0x40] sm:$0xff]
  %v415 = vld [vmem:[%s3 + $0x48] sm:$0xff]
  %v416 = vld [vmem:[%s3 + $0x50] sm:$0xff]
  %v417 = vld [vmem:[%s3 + $0x58] sm:$0xff]
  %v418 = vld [vmem:[%s3 + $0x60] sm:$0xff]
  %v419 = vld [vmem:[%s3 + $0x68] sm:$0xff]
  %v420 = vld [vmem:[%s3 + $0x70] sm:$0xff]
  %v421 = vld [vmem:[%s3 + $0x78] sm:$0xff]
  %v422 = vld [vmem:[%s3 + $0x80] sm:$0xff]
  %v423 = vld [vmem:[%s3 + $0x88] sm:$0xff]
  %v424 = vld [vmem:[%s3 + $0x90] sm:$0xff]
  %v425 = vld [vmem:[%s3 + $0x98] sm:$0xff]
  %v426 = vld [vmem:[%s3 + $0xa0] sm:$0xff]
  %v427 = vld [vmem:[%s3 + $0xa8] sm:$0xff]
  %v428 = vld [vmem:[%s3 + $0xb0] sm:$0xff]
  %v429 = vld [vmem:[%s3 + $0xb8] sm:$0xff]
  %v430 = vld [vmem:[%s3 + $0xc0] sm:$0xff]
  %v431 = vld [vmem:[%s3 + $0xc8] sm:$0xff]
  %v432 = vld [vmem:[%s3 + $0xd0] sm:$0xff]
  %v433 = vld [vmem:[%s3 + $0xd8] sm:$0xff]
  %v434 = vld [vmem:[%s3 + $0xe0] sm:$0xff]
  %v435 = vld [vmem:[%s3 + $0xe8] sm:$0xff]
  %v436 = vld [vmem:[%s3 + $0xf0] sm:$0xff]
  %v437 = vld [vmem:[%s3 + $0xf8] sm:$0xff]
  %v438 = vld [vmem:[%s3 + $0x100] sm:$0xff]
  %v439 = vld [vmem:[%s3 + $0x108] sm:$0xff]
  %v440 = vld [vmem:[%s3 + $0x110] sm:$0xff]
  %v441 = vld [vmem:[%s3 + $0x118] sm:$0xff]
  %v442 = vld [vmem:[%s3 + $0x120] sm:$0xff]
  %v443 = vld [vmem:[%s3 + $0x128] sm:$0xff]
  %v444 = vld [vmem:[%s3 + $0x130] sm:$0xff]
  %v445 = vld [vmem:[%s3 + $0x138] sm:$0xff]
  %v446 = vld [vmem:[%s3 + $0x140] sm:$0xff]
  %v447 = vld [vmem:[%s3 + $0x148] sm:$0xff]
  %v448 = vld [vmem:[%s3 + $0x150] sm:$0xff]
  %v449 = vld [vmem:[%s3 + $0x158] sm:$0xff]
  %v450 = vld [vmem:[%s3 + $0x160] sm:$0xff]
  %v451 = vld [vmem:[%s3 + $0x168] sm:$0xff]
  %v452 = vld [vmem:[%s3 + $0x170] sm:$0xff]
  %v453 = vld [vmem:[%s3 + $0x178] sm:$0xff]
  %v454 = vld [vmem:[%s3 + $0x180] sm:$0xff]
  %v455 = vld [vmem:[%s3 + $0x188] sm:$0xff]
  %v456 = vld [vmem:[%s3 + $0x190] sm:$0xff]
  %v457 = vld [vmem:[%s3 + $0x198] sm:$0xff]
  %v458 = vld [vmem:[%s3 + $0x1a0] sm:$0xff]
  %v459 = vld [vmem:[%s3 + $0x1a8] sm:$0xff]
  %v460 = vld [vmem:[%s3 + $0x1b0] sm:$0xff]
  %v461 = vld [vmem:[%s3 + $0x1b8] sm:$0xff]
  %v462 = vld [vmem:[%s3 + $0x1c0] sm:$0xff]
  %v463 = vld [vmem:[%s3 + $0x1c8] sm:$0xff]
  %v464 = vld [vmem:[%s3 + $0x1d0] sm:$0xff]
  %v465 = vld [vmem:[%s3 + $0x1d8] sm:$0xff]
  %v466 = vld [vmem:[%s3 + $0x1e0] sm:$0xff]
  %v467 = vld [vmem:[%s3 + $0x1e8] sm:$0xff]
  %v468 = vld [vmem:[%s3 + $0x1f0] sm:$0xff]
  %v469 = vld [vmem:[%s3 + $0x1f8] sm:$0xff]
  %v470 = vld [vmem:[%s3 + $0x200] sm:$0xff]
  %v471 = vld [vmem:[%s3 + $0x208] sm:$0xff]
  %v472 = vld [vmem:[%s3 + $0x210] sm:$0xff]
  %v473 = vld [vmem:[%s3 + $0x218] sm:$0xff]
  %v474 = vld [vmem:[%s3 + $0x220] sm:$0xff]
  %v475 = vld [vmem:[%s3 + $0x228] sm:$0xff]
  %v476 = vld [vmem:[%s3 + $0x230] sm:$0xff]
  %v477 = vld [vmem:[%s3 + $0x238] sm:$0xff]
  %v478 = vld [vmem:[%s3 + $0x240] sm:$0xff]
  %v479 = vld [vmem:[%s3 + $0x248] sm:$0xff]
  %v480 = vld [vmem:[%s3 + $0x250] sm:$0xff]
  %v481 = vld [vmem:[%s3 + $0x258] sm:$0xff]
  %v482 = vld [vmem:[%s3 + $0x260] sm:$0xff]
  %v483 = vld [vmem:[%s3 + $0x268] sm:$0xff]
  %v484 = vld [vmem:[%s3 + $0x270] sm:$0xff]
  %v485 = vld [vmem:[%s3 + $0x278] sm:$0xff]
  %v486 = vld [vmem:[%s3 + $0x280] sm:$0xff]
  %v487 = vld [vmem:[%s3 + $0x288] sm:$0xff]
  %v488 = vld [vmem:[%s3 + $0x290] sm:$0xff]
  %v489 = vld [vmem:[%s3 + $0x298] sm:$0xff]
  %v490 = vld [vmem:[%s3 + $0x2a0] sm:$0xff]
  %v491 = vld [vmem:[%s3 + $0x2a8] sm:$0xff]
  %v492 = vld [vmem:[%s3 + $0x2b0] sm:$0xff]
  %v493 = vld [vmem:[%s3 + $0x2b8] sm:$0xff]
  %v494 = vld [vmem:[%s3 + $0x2c0] sm:$0xff]
  %v495 = vld [vmem:[%s3 + $0x2c8] sm:$0xff]
  %v496 = vld [vmem:[%s3 + $0x2d0] sm:$0xff]
  %v497 = vld [vmem:[%s3 + $0x2d8] sm:$0xff]
  %v498 = vld [vmem:[%s3 + $0x2e0] sm:$0xff]
  %v499 = vld [vmem:[%s3 + $0x2e8] sm:$0xff]
  %v500 = vld [vmem:[%s3 + $0x2f0] sm:$0xff]
  %v501 = vld [vmem:[%s3 + $0x2f8] sm:$0xff]
  %v502 = vld [vmem:[%s3 + $0x300] sm:$0xff]
  %v503 = vld [vmem:[%s3 + $0x308] sm:$0xff]
  %v504 = vld [vmem:[%s3 + $0x310] sm:$0xff]
  %v505 = vld [vmem:[%s3 + $0x318] sm:$0xff]
  %v506 = vld [vmem:[%s4] sm:$0x1]
  %v508 = vlaneseq
  %v509 = vshrl.u32 %v508, 7
  %v510 = vsub.s32 0, %v509
  %v511 = vrot.slane %v506, %v510
  %v514 = vsel %vm298, %v405, 0
  %516 = vmatprep.subr.mxu0 0.0
  %517 = vmatpush1.msra.mxu0 %v421
  %518 = vmatprep.subr.mxu0 0.0
  %519 = vmatpush1.msra.mxu0 %v420
  %520 = vmatprep.subr.mxu0 0.0
  %521 = vmatpush1.msra.mxu0 %v419
  %522 = vmatprep.subr.mxu0 0.0
  %523 = vmatpush1.msra.mxu0 %v418
  %524 = vmatprep.subr.mxu0 0.0
  %525 = vmatpush1.msra.mxu0 %v417
  %526 = vmatprep.subr.mxu0 0.0
  %527 = vmatpush1.msra.mxu0 %v416
  %528 = vmatprep.subr.mxu0 0.0
  %529 = vmatpush1.msra.mxu0 %v415
  %530 = vmatprep.subr.mxu0 0.0
  %531 = vmatpush1.msra.mxu0 %v414
  %532 = vmatprep.subr.mxu0 0.0
  %533 = vmatpush1.msra.mxu0 %v413
  %534 = vmatprep.subr.mxu0 0.0
  %535 = vmatpush1.msra.mxu0 %v412
  %536 = vmatprep.subr.mxu0 0.0
  %537 = vmatpush1.msra.mxu0 %v411
  %538 = vmatprep.subr.mxu0 0.0
  %539 = vmatpush1.msra.mxu0 %v410
  %540 = vmatprep.subr.mxu0 0.0
  %541 = vmatpush1.msra.mxu0 %v409
  %542 = vmatprep.subr.mxu0 0.0
  %543 = vmatpush1.msra.mxu0 %v408
  %544 = vmatprep.subr.mxu0 0.0
  %545 = vmatpush1.msra.mxu0 %v407
  %546 = vmatprep.subr.mxu0 0.0
  %547 = vmatpush1.msra.mxu0 %v406
  %548 = vmatprep.subr.mxu0 0.0
  %549 = vmatpush2.msra.mxu0 %v437
  %550 = vmatprep.subr.mxu0 0.0
  %551 = vmatpush2.msra.mxu0 %v436
  %552 = vmatprep.subr.mxu0 0.0
  %553 = vmatpush2.msra.mxu0 %v435
  %554 = vmatprep.subr.mxu0 0.0
  %555 = vmatpush2.msra.mxu0 %v434
  %556 = vmatprep.subr.mxu0 0.0
  %557 = vmatpush2.msra.mxu0 %v433
  %558 = vmatprep.subr.mxu0 0.0
  %559 = vmatpush2.msra.mxu0 %v432
  %560 = vmatprep.subr.mxu0 0.0
  %561 = vmatpush2.msra.mxu0 %v431
  %562 = vmatprep.subr.mxu0 0.0
  %563 = vmatpush2.msra.mxu0 %v430
  %564 = vmatprep.subr.mxu0 0.0
  %565 = vmatpush2.msra.mxu0 %v429
  %566 = vmatprep.subr.mxu0 0.0
  %567 = vmatpush2.msra.mxu0 %v428
  %568 = vmatprep.subr.mxu0 0.0
  %569 = vmatpush2.msra.mxu0 %v427
  %570 = vmatprep.subr.mxu0 0.0
  %571 = vmatpush2.msra.mxu0 %v426
  %572 = vmatprep.subr.mxu0 0.0
  %573 = vmatpush2.msra.mxu0 %v425
  %574 = vmatprep.subr.mxu0 0.0
  %575 = vmatpush2.msra.mxu0 %v424
  %576 = vmatprep.subr.mxu0 0.0
  %577 = vmatpush2.msra.mxu0 %v423
  %578 = vmatprep.subr.mxu0 0.0
  %579 = vmatpush2.msra.mxu0 %v422
  %580 = vmatprep.mubr.f32.mxu0 %v400
  %581 = vmatmul.mubr.f32.gmra.mxu0 %v399
  %v582 = vpop.f32.mrf.mxu0
  %v583 = vadd.f32 %v511, %v582
  %v584 = vpop.f32.mrf.mxu0
  %585 = vdwg.mxu0
  %586 = vmatprep.subr.mxu0 0.0
  %587 = vmatpush1.msra.mxu0 %v453
  %588 = vmatprep.subr.mxu0 0.0
  %589 = vmatpush1.msra.mxu0 %v452
  %590 = vmatprep.subr.mxu0 0.0
  %591 = vmatpush1.msra.mxu0 %v451
  %592 = vmatprep.subr.mxu0 0.0
  %593 = vmatpush1.msra.mxu0 %v450
  %594 = vmatprep.subr.mxu0 0.0
  %595 = vmatpush1.msra.mxu0 %v449
  %596 = vmatprep.subr.mxu0 0.0
  %597 = vmatpush1.msra.mxu0 %v448
  %598 = vmatprep.subr.mxu0 0.0
  %599 = vmatpush1.msra.mxu0 %v447
  %600 = vmatprep.subr.mxu0 0.0
  %601 = vmatpush1.msra.mxu0 %v446
  %602 = vmatprep.subr.mxu0 0.0
  %603 = vmatpush1.msra.mxu0 %v445
  %604 = vmatprep.subr.mxu0 0.0
  %605 = vmatpush1.msra.mxu0 %v444
  %606 = vmatprep.subr.mxu0 0.0
  %607 = vmatpush1.msra.mxu0 %v443
  %608 = vmatprep.subr.mxu0 0.0
  %609 = vmatpush1.msra.mxu0 %v442
  %610 = vmatprep.subr.mxu0 0.0
  %611 = vmatpush1.msra.mxu0 %v441
  %612 = vmatprep.subr.mxu0 0.0
  %613 = vmatpush1.msra.mxu0 %v440
  %614 = vmatprep.subr.mxu0 0.0
  %615 = vmatpush1.msra.mxu0 %v439
  %616 = vmatprep.subr.mxu0 0.0
  %617 = vmatpush1.msra.mxu0 %v438
  %618 = vmatprep.subr.mxu0 0.0
  %619 = vmatpush2.msra.mxu0 %v469
  %620 = vmatprep.subr.mxu0 0.0
  %621 = vmatpush2.msra.mxu0 %v468
  %622 = vmatprep.subr.mxu0 0.0
  %623 = vmatpush2.msra.mxu0 %v467
  %624 = vmatprep.subr.mxu0 0.0
  %625 = vmatpush2.msra.mxu0 %v466
  %626 = vmatprep.subr.mxu0 0.0
  %627 = vmatpush2.msra.mxu0 %v465
  %628 = vmatprep.subr.mxu0 0.0
  %629 = vmatpush2.msra.mxu0 %v464
  %630 = vmatprep.subr.mxu0 0.0
  %631 = vmatpush2.msra.mxu0 %v463
  %632 = vmatprep.subr.mxu0 0.0
  %633 = vmatpush2.msra.mxu0 %v462
  %634 = vmatprep.subr.mxu0 0.0
  %635 = vmatpush2.msra.mxu0 %v461
  %636 = vmatprep.subr.mxu0 0.0
  %637 = vmatpush2.msra.mxu0 %v460
  %638 = vmatprep.subr.mxu0 0.0
  %639 = vmatpush2.msra.mxu0 %v459
  %640 = vmatprep.subr.mxu0 0.0
  %641 = vmatpush2.msra.mxu0 %v458
  %642 = vmatprep.subr.mxu0 0.0
  %643 = vmatpush2.msra.mxu0 %v457
  %644 = vmatprep.subr.mxu0 0.0
  %645 = vmatpush2.msra.mxu0 %v456
  %646 = vmatprep.subr.mxu0 0.0
  %647 = vmatpush2.msra.mxu0 %v455
  %648 = vmatprep.subr.mxu0 0.0
  %649 = vmatpush2.msra.mxu0 %v454
  %650 = vmatprep.mubr.f32.mxu0 %v402
  %651 = vmatmul.mubr.f32.gmra.mxu0 %v401
  %v652 = vpop.f32.mrf.mxu0
  %v653 = vadd.f32 %v583, %v652
  %v654 = vpop.f32.mrf.mxu0
  %655 = vdwg.mxu0
  %656 = vmatprep.subr.mxu0 0.0
  %657 = vmatpush1.msra.mxu0 %v485
  %658 = vmatprep.subr.mxu0 0.0
  %659 = vmatpush1.msra.mxu0 %v484
  %660 = vmatprep.subr.mxu0 0.0
  %661 = vmatpush1.msra.mxu0 %v483
  %662 = vmatprep.subr.mxu0 0.0
  %663 = vmatpush1.msra.mxu0 %v482
  %664 = vmatprep.subr.mxu0 0.0
  %665 = vmatpush1.msra.mxu0 %v481
  %666 = vmatprep.subr.mxu0 0.0
  %667 = vmatpush1.msra.mxu0 %v480
  %668 = vmatprep.subr.mxu0 0.0
  %669 = vmatpush1.msra.mxu0 %v479
  %670 = vmatprep.subr.mxu0 0.0
  %671 = vmatpush1.msra.mxu0 %v478
  %672 = vmatprep.subr.mxu0 0.0
  %673 = vmatpush1.msra.mxu0 %v477
  %674 = vmatprep.subr.mxu0 0.0
  %675 = vmatpush1.msra.mxu0 %v476
  %676 = vmatprep.subr.mxu0 0.0
  %677 = vmatpush1.msra.mxu0 %v475
  %678 = vmatprep.subr.mxu0 0.0
  %679 = vmatpush1.msra.mxu0 %v474
  %680 = vmatprep.subr.mxu0 0.0
  %681 = vmatpush1.msra.mxu0 %v473
  %682 = vmatprep.subr.mxu0 0.0
  %683 = vmatpush1.msra.mxu0 %v472
  %684 = vmatprep.subr.mxu0 0.0
  %685 = vmatpush1.msra.mxu0 %v471
  %686 = vmatprep.subr.mxu0 0.0
  %687 = vmatpush1.msra.mxu0 %v470
  %688 = vmatprep.subr.mxu0 0.0
  %689 = vmatpush2.msra.mxu0 %v501
  %690 = vmatprep.subr.mxu0 0.0
  %691 = vmatpush2.msra.mxu0 %v500
  %692 = vmatprep.subr.mxu0 0.0
  %693 = vmatpush2.msra.mxu0 %v499
  %694 = vmatprep.subr.mxu0 0.0
  %695 = vmatpush2.msra.mxu0 %v498
  %696 = vmatprep.subr.mxu0 0.0
  %697 = vmatpush2.msra.mxu0 %v497
  %698 = vmatprep.subr.mxu0 0.0
  %699 = vmatpush2.msra.mxu0 %v496
  %700 = vmatprep.subr.mxu0 0.0
  %701 = vmatpush2.msra.mxu0 %v495
  %702 = vmatprep.subr.mxu0 0.0
  %703 = vmatpush2.msra.mxu0 %v494
  %704 = vmatprep.subr.mxu0 0.0
  %705 = vmatpush2.msra.mxu0 %v493
  %706 = vmatprep.subr.mxu0 0.0
  %707 = vmatpush2.msra.mxu0 %v492
  %708 = vmatprep.subr.mxu0 0.0
  %709 = vmatpush2.msra.mxu0 %v491
  %710 = vmatprep.subr.mxu0 0.0
  %711 = vmatpush2.msra.mxu0 %v490
  %712 = vmatprep.subr.mxu0 0.0
  %713 = vmatpush2.msra.mxu0 %v489
  %714 = vmatprep.subr.mxu0 0.0
  %715 = vmatpush2.msra.mxu0 %v488
  %716 = vmatprep.subr.mxu0 0.0
  %717 = vmatpush2.msra.mxu0 %v487
  %718 = vmatprep.subr.mxu0 0.0
  %719 = vmatpush2.msra.mxu0 %v486
  %720 = vmatprep.mubr.f32.mxu0 %v404
  %721 = vmatmul.mubr.f32.gmra.mxu0 %v403
  %v722 = vpop.f32.mrf.mxu0
  %v723 = vadd.f32 %v653, %v722
  %v724 = vpop.f32.mrf.mxu0
  %725 = vdwg.mxu0
  %726 = vmatprep.subr.mxu0 0.0
  %727 = vmatpush1.msra.mxu0 0.0
  %728 = vmatprep.subr.mxu0 0.0
  %729 = vmatpush1.msra.mxu0 0.0
  %730 = vmatprep.subr.mxu0 0.0
  %731 = vmatpush1.msra.mxu0 0.0
  %732 = vmatprep.subr.mxu0 0.0
  %733 = vmatpush1.msra.mxu0 0.0
  %734 = vmatprep.subr.mxu0 0.0
  %735 = vmatpush1.msra.mxu0 0.0
  %736 = vmatprep.subr.mxu0 0.0
  %737 = vmatpush1.msra.mxu0 0.0
  %738 = vmatprep.subr.mxu0 0.0
  %739 = vmatpush1.msra.mxu0 0.0
  %740 = vmatprep.subr.mxu0 0.0
  %741 = vmatpush1.msra.mxu0 0.0
  %742 = vmatprep.subr.mxu0 0.0
  %743 = vmatpush1.msra.mxu0 0.0
  %744 = vmatprep.subr.mxu0 0.0
  %745 = vmatpush1.msra.mxu0 0.0
  %746 = vmatprep.subr.mxu0 0.0
  %747 = vmatpush1.msra.mxu0 0.0
  %748 = vmatprep.subr.mxu0 0.0
  %749 = vmatpush1.msra.mxu0 0.0
  %750 = vmatprep.subr.mxu0 0.0
  %751 = vmatpush1.msra.mxu0 %v505
  %752 = vmatprep.subr.mxu0 0.0
  %753 = vmatpush1.msra.mxu0 %v504
  %754 = vmatprep.subr.mxu0 0.0
  %755 = vmatpush1.msra.mxu0 %v503
  %756 = vmatprep.subr.mxu0 0.0
  %757 = vmatpush1.msra.mxu0 %v502
  %758 = vmatprep.subr.mxu0 0.0
  %759 = vmatpush2.msra.mxu0 0.0
  %760 = vmatprep.subr.mxu0 0.0
  %761 = vmatpush2.msra.mxu0 0.0
  %762 = vmatprep.subr.mxu0 0.0
  %763 = vmatpush2.msra.mxu0 0.0
  %764 = vmatprep.subr.mxu0 0.0
  %765 = vmatpush2.msra.mxu0 0.0
  %766 = vmatprep.subr.mxu0 0.0
  %767 = vmatpush2.msra.mxu0 0.0
  %768 = vmatprep.subr.mxu0 0.0
  %769 = vmatpush2.msra.mxu0 0.0
  %770 = vmatprep.subr.mxu0 0.0
  %771 = vmatpush2.msra.mxu0 0.0
  %772 = vmatprep.subr.mxu0 0.0
  %773 = vmatpush2.msra.mxu0 0.0
  %774 = vmatprep.subr.mxu0 0.0
  %775 = vmatpush2.msra.mxu0 0.0
  %776 = vmatprep.subr.mxu0 0.0
  %777 = vmatpush2.msra.mxu0 0.0
  %778 = vmatprep.subr.mxu0 0.0
  %779 = vmatpush2.msra.mxu0 0.0
  %780 = vmatprep.subr.mxu0 0.0
  %781 = vmatpush2.msra.mxu0 0.0
  %782 = vmatprep.subr.mxu0 0.0
  %783 = vmatpush2.msra.mxu0 0.0
  %784 = vmatprep.subr.mxu0 0.0
  %785 = vmatpush2.msra.mxu0 0.0
  %786 = vmatprep.subr.mxu0 0.0
  %787 = vmatpush2.msra.mxu0 0.0
  %788 = vmatprep.subr.mxu0 0.0
  %789 = vmatpush2.msra.mxu0 0.0
  %790 = vmatprep.mubr.f32.mxu0 0.0
  %791 = vmatmul.mubr.f32.gmra.mxu0 %v514
  %v792 = vpop.f32.mrf.mxu0
  %v793 = vadd.f32 %v723, %v792
  %v794 = vpop.f32.mrf.mxu0
  %795 = vdwg.mxu0
  %v796 = vmax.f32 %v793, 0.0
  %vm797 = vcmask 523264
  %798 = vst.msk [vmem:[#allocation3] sm:$0xff] %vm797, %v796
  %v799 = vld [vmem:[#allocation3] sm:$0x3]
  %vm800 = vcmask 517120
  %801 = vst.msk [vmem:[#allocation4] sm:$0x3] %vm800, %v799
  %v802 = vld [vmem:[#allocation3 + $0x2] sm:$0x3]
  %v805 = vunpack.c.l.s4 1983009808
  %v806 = vunpack.c.0.s8 %v805
  %v807 = vlaneseq
  %v808 = vshrl.u32 %v807, 7
  %v809 = vsub.s32 %v806, %v808
  %v810 = vrot.slane %v802, %v809
  %811 = vrot.lane.b32.xlu0 %v810, 64
  %v812 = vpop.permute.xlu0 %811
  %vm814 = vcmask 1041920
  %815 = vst.msk [vmem:[#allocation4] sm:$0x3] %vm814, %v812
  %v816 = vld [vmem:[#allocation3 + $0x4] sm:$0x3]
  %817 = vst.msk [vmem:[#allocation4 + $0x2] sm:$0x3] %vm800, %v816
  %v818 = vld [vmem:[#allocation3 + $0x6] sm:$0x3]
  %v821 = vunpack.c.l.s4 1983009808
  %v822 = vunpack.c.0.s8 %v821
  %v823 = vlaneseq
  %v824 = vshrl.u32 %v823, 7
  %v825 = vsub.s32 %v822, %v824
  %v826 = vrot.slane %v818, %v825
  %827 = vrot.lane.b32.xlu0 %v826, 64
  %v828 = vpop.permute.xlu0 %827
  %830 = vst.msk [vmem:[#allocation4 + $0x2] sm:$0x3] %vm814, %v828
  %v831 = vld [vmem:[#allocation4] sm:$0xf]
  %v832 = vld [vmem:[%s5] sm:$0xff]
  %v833 = vld [vmem:[%s5 + $0x8] sm:$0xff]
  %v834 = vld [vmem:[%s5 + $0x10] sm:$0xff]
  %v835 = vld [vmem:[%s5 + $0x18] sm:$0xff]
  %v836 = vld [vmem:[%s5 + $0x20] sm:$0xff]
  %v837 = vld [vmem:[%s5 + $0x28] sm:$0xff]
  %v838 = vld [vmem:[%s5 + $0x30] sm:$0xff]
  %v839 = vld [vmem:[%s5 + $0x38] sm:$0xff]
  %v840 = vld [vmem:[%s5 + $0x40] sm:$0xff]
  %v841 = vld [vmem:[%s5 + $0x48] sm:$0xff]
  %v842 = vld [vmem:[%s5 + $0x50] sm:$0xff]
  %v843 = vld [vmem:[%s5 + $0x58] sm:$0xff]
  %v844 = vld [vmem:[%s5 + $0x60] sm:$0xff]
  %v845 = vld [vmem:[%s5 + $0x68] sm:$0xff]
  %v846 = vld [vmem:[%s5 + $0x70] sm:$0xff]
  %v847 = vld [vmem:[%s5 + $0x78] sm:$0xff]
  %v848 = vld [vmem:[%s5 + $0x80] sm:$0xff]
  %v849 = vld [vmem:[%s5 + $0x88] sm:$0xff]
  %v850 = vld [vmem:[%s5 + $0x90] sm:$0xff]
  %v851 = vld [vmem:[%s5 + $0x98] sm:$0xff]
  %v852 = vld [vmem:[%s5 + $0xa0] sm:$0xff]
  %v853 = vld [vmem:[%s5 + $0xa8] sm:$0xff]
  %v854 = vld [vmem:[%s5 + $0xb0] sm:$0xff]
  %v855 = vld [vmem:[%s5 + $0xb8] sm:$0xff]
  %v856 = vld [vmem:[%s5 + $0xc0] sm:$0xff]
  %v857 = vld [vmem:[%s5 + $0xc8] sm:$0xff]
  %v858 = vld [vmem:[%s5 + $0xd0] sm:$0xff]
  %v859 = vld [vmem:[%s5 + $0xd8] sm:$0xff]
  %v860 = vld [vmem:[%s5 + $0xe0] sm:$0xff]
  %v861 = vld [vmem:[%s5 + $0xe8] sm:$0xff]
  %v862 = vld [vmem:[%s5 + $0xf0] sm:$0xff]
  %v863 = vld [vmem:[%s5 + $0xf8] sm:$0xff]
  %v864 = vld [vmem:[%s6] sm:$0x1]
  %v866 = vlaneseq
  %v867 = vshrl.u32 %v866, 7
  %v868 = vsub.s32 0, %v867
  %v869 = vrot.slane %v864, %v868
  %v873 = vunpack.c.l.s4 1983009808
  %v874 = vunpack.c.0.s8 %v873
  %v875 = vlaneseq
  %v876 = vshrl.u32 %v875, 7
  %v877 = vsub.s32 %v874, %v876
  %v878 = vrot.slane %v831, %v877
  %v879 = vcombine.high %v878, %v878
  %882 = vmatprep.subr.mxu0 0.0
  %883 = vmatpush1.msra.mxu0 %v847
  %884 = vmatprep.subr.mxu0 0.0
  %885 = vmatpush1.msra.mxu0 %v846
  %886 = vmatprep.subr.mxu0 0.0
  %887 = vmatpush1.msra.mxu0 %v845
  %888 = vmatprep.subr.mxu0 0.0
  %889 = vmatpush1.msra.mxu0 %v844
  %890 = vmatprep.subr.mxu0 0.0
  %891 = vmatpush1.msra.mxu0 %v843
  %892 = vmatprep.subr.mxu0 0.0
  %893 = vmatpush1.msra.mxu0 %v842
  %894 = vmatprep.subr.mxu0 0.0
  %895 = vmatpush1.msra.mxu0 %v841
  %896 = vmatprep.subr.mxu0 0.0
  %897 = vmatpush1.msra.mxu0 %v840
  %898 = vmatprep.subr.mxu0 0.0
  %899 = vmatpush1.msra.mxu0 %v839
  %900 = vmatprep.subr.mxu0 0.0
  %901 = vmatpush1.msra.mxu0 %v838
  %902 = vmatprep.subr.mxu0 0.0
  %903 = vmatpush1.msra.mxu0 %v837
  %904 = vmatprep.subr.mxu0 0.0
  %905 = vmatpush1.msra.mxu0 %v836
  %906 = vmatprep.subr.mxu0 0.0
  %907 = vmatpush1.msra.mxu0 %v835
  %908 = vmatprep.subr.mxu0 0.0
  %909 = vmatpush1.msra.mxu0 %v834
  %910 = vmatprep.subr.mxu0 0.0
  %911 = vmatpush1.msra.mxu0 %v833
  %912 = vmatprep.subr.mxu0 0.0
  %913 = vmatpush1.msra.mxu0 %v832
  %914 = vmatprep.subr.mxu0 0.0
  %915 = vmatpush2.msra.mxu0 %v863
  %916 = vmatprep.subr.mxu0 0.0
  %917 = vmatpush2.msra.mxu0 %v862
  %918 = vmatprep.subr.mxu0 0.0
  %919 = vmatpush2.msra.mxu0 %v861
  %920 = vmatprep.subr.mxu0 0.0
  %921 = vmatpush2.msra.mxu0 %v860
  %922 = vmatprep.subr.mxu0 0.0
  %923 = vmatpush2.msra.mxu0 %v859
  %924 = vmatprep.subr.mxu0 0.0
  %925 = vmatpush2.msra.mxu0 %v858
  %926 = vmatprep.subr.mxu0 0.0
  %927 = vmatpush2.msra.mxu0 %v857
  %928 = vmatprep.subr.mxu0 0.0
  %929 = vmatpush2.msra.mxu0 %v856
  %930 = vmatprep.subr.mxu0 0.0
  %931 = vmatpush2.msra.mxu0 %v855
  %932 = vmatprep.subr.mxu0 0.0
  %933 = vmatpush2.msra.mxu0 %v854
  %934 = vmatprep.subr.mxu0 0.0
  %935 = vmatpush2.msra.mxu0 %v853
  %936 = vmatprep.subr.mxu0 0.0
  %937 = vmatpush2.msra.mxu0 %v852
  %938 = vmatprep.subr.mxu0 0.0
  %939 = vmatpush2.msra.mxu0 %v851
  %940 = vmatprep.subr.mxu0 0.0
  %941 = vmatpush2.msra.mxu0 %v850
  %942 = vmatprep.subr.mxu0 0.0
  %943 = vmatpush2.msra.mxu0 %v849
  %944 = vmatprep.subr.mxu0 0.0
  %945 = vmatpush2.msra.mxu0 %v848
  %946 = vmatprep.mubr.f32.mxu0 %v879
  %947 = vmatmul.mubr.f32.gmra.mxu0 %v878
  %v948 = vpop.f32.mrf.mxu0
  %v949 = vadd.f32 %v869, %v948
  %v950 = vpop.f32.mrf.mxu0
  %951 = vdwg.mxu0
  %v952 = vmax.f32 %v949, 0.0
  %v953 = vld [vmem:[%s7] sm:$0xff]
  %v954 = vld [vmem:[%s7 + $0x8] sm:$0xff]
  %v955 = vld [vmem:[%s7 + $0x10] sm:$0xff]
  %v956 = vld [vmem:[%s7 + $0x18] sm:$0xff]
  %v957 = vld [vmem:[%s7 + $0x20] sm:$0xff]
  %v958 = vld [vmem:[%s7 + $0x28] sm:$0xff]
  %v959 = vld [vmem:[%s7 + $0x30] sm:$0xff]
  %v960 = vld [vmem:[%s7 + $0x38] sm:$0xff]
  %v961 = vld [vmem:[%s7 + $0x40] sm:$0xff]
  %v962 = vld [vmem:[%s7 + $0x48] sm:$0xff]
  %v963 = vld [vmem:[%s7 + $0x50] sm:$0xff]
  %v964 = vld [vmem:[%s7 + $0x58] sm:$0xff]
  %v965 = vld [vmem:[%s7 + $0x60] sm:$0xff]
  %v966 = vld [vmem:[%s7 + $0x68] sm:$0xff]
  %v967 = vld [vmem:[%s7 + $0x70] sm:$0xff]
  %v968 = vld [vmem:[%s7 + $0x78] sm:$0xff]
  %v969 = vld [vmem:[%s7 + $0x80] sm:$0xff]
  %v970 = vld [vmem:[%s7 + $0x88] sm:$0xff]
  %v971 = vld [vmem:[%s7 + $0x90] sm:$0xff]
  %v972 = vld [vmem:[%s7 + $0x98] sm:$0xff]
  %v973 = vld [vmem:[%s7 + $0xa0] sm:$0xff]
  %v974 = vld [vmem:[%s7 + $0xa8] sm:$0xff]
  %v975 = vld [vmem:[%s7 + $0xb0] sm:$0xff]
  %v976 = vld [vmem:[%s7 + $0xb8] sm:$0xff]
  %v977 = vld [vmem:[%s7 + $0xc0] sm:$0xff]
  %v978 = vld [vmem:[%s7 + $0xc8] sm:$0xff]
  %v979 = vld [vmem:[%s7 + $0xd0] sm:$0xff]
  %v980 = vld [vmem:[%s7 + $0xd8] sm:$0xff]
  %v981 = vld [vmem:[%s7 + $0xe0] sm:$0xff]
  %v982 = vld [vmem:[%s7 + $0xe8] sm:$0xff]
  %v983 = vld [vmem:[%s7 + $0xf0] sm:$0xff]
  %v984 = vld [vmem:[%s7 + $0xf8] sm:$0xff]
  %v985 = vld [vmem:[%s7 + $0x100] sm:$0xff]
  %v986 = vld [vmem:[%s7 + $0x108] sm:$0xff]
  %v987 = vld [vmem:[%s7 + $0x110] sm:$0xff]
  %v988 = vld [vmem:[%s7 + $0x118] sm:$0xff]
  %v989 = vld [vmem:[%s7 + $0x120] sm:$0xff]
  %v990 = vld [vmem:[%s7 + $0x128] sm:$0xff]
  %v991 = vld [vmem:[%s7 + $0x130] sm:$0xff]
  %v992 = vld [vmem:[%s7 + $0x138] sm:$0xff]
  %v993 = vld [vmem:[%s7 + $0x140] sm:$0xff]
  %v994 = vld [vmem:[%s7 + $0x148] sm:$0xff]
  %v995 = vld [vmem:[%s7 + $0x150] sm:$0xff]
  %v996 = vld [vmem:[%s7 + $0x158] sm:$0xff]
  %v997 = vld [vmem:[%s7 + $0x160] sm:$0xff]
  %v998 = vld [vmem:[%s7 + $0x168] sm:$0xff]
  %v999 = vld [vmem:[%s7 + $0x170] sm:$0xff]
  %v1000 = vld [vmem:[%s7 + $0x178] sm:$0xff]
  %v1001 = vld [vmem:[%s8] sm:$0x7]
  %v1003 = vlaneseq
  %v1004 = vshrl.u32 %v1003, 7
  %v1005 = vsub.s32 0, %v1004
  %v1006 = vrot.slane %v1001, %v1005
  %v1007 = vlaneseq
  %v1008 = vshrl.u32 %v1007, 7
  %v1009 = vsub.s32 1, %v1008
  %v1010 = vrot.slane %v1001, %v1009
  %v1011 = vlaneseq
  %v1012 = vshrl.u32 %v1011, 7
  %v1013 = vsub.s32 2, %v1012
  %v1014 = vrot.slane %v1001, %v1013
  %1018 = vmatprep.subr.mxu0 %v999
  %1019 = vmatpush1.msra.mxu0 %v998
  %1020 = vmatprep.subr.mxu0 %v996
  %1021 = vmatpush1.msra.mxu0 %v995
  %1022 = vmatprep.subr.mxu0 %v993
  %1023 = vmatpush1.msra.mxu0 %v992
  %1024 = vmatprep.subr.mxu0 %v990
  %1025 = vmatpush1.msra.mxu0 %v989
  %1026 = vmatprep.subr.mxu0 %v987
  %1027 = vmatpush1.msra.mxu0 %v986
  %1028 = vmatprep.subr.mxu0 %v984
  %1029 = vmatpush1.msra.mxu0 %v983
  %1030 = vmatprep.subr.mxu0 %v981
  %1031 = vmatpush1.msra.mxu0 %v980
  %1032 = vmatprep.subr.mxu0 %v978
  %1033 = vmatpush1.msra.mxu0 %v977
  %1034 = vmatprep.subr.mxu0 %v975
  %1035 = vmatpush1.msra.mxu0 %v974
  %1036 = vmatprep.subr.mxu0 %v972
  %1037 = vmatpush1.msra.mxu0 %v971
  %1038 = vmatprep.subr.mxu0 %v969
  %1039 = vmatpush1.msra.mxu0 %v968
  %1040 = vmatprep.subr.mxu0 %v966
  %1041 = vmatpush1.msra.mxu0 %v965
  %1042 = vmatprep.subr.mxu0 %v963
  %1043 = vmatpush1.msra.mxu0 %v962
  %1044 = vmatprep.subr.mxu0 %v960
  %1045 = vmatpush1.msra.mxu0 %v959
  %1046 = vmatprep.subr.mxu0 %v957
  %1047 = vmatpush1.msra.mxu0 %v956
  %1048 = vmatprep.subr.mxu0 %v954
  %1049 = vmatpush1.msra.mxu0 %v953
  %1050 = vmatprep.subr.mxu0 0.0
  %1051 = vmatpush2.msra.mxu0 0.0
  %1052 = vmatprep.subr.mxu0 0.0
  %1053 = vmatpush2.msra.mxu0 0.0
  %1054 = vmatprep.subr.mxu0 0.0
  %1055 = vmatpush2.msra.mxu0 0.0
  %1056 = vmatprep.subr.mxu0 0.0
  %1057 = vmatpush2.msra.mxu0 0.0
  %1058 = vmatprep.subr.mxu0 0.0
  %1059 = vmatpush2.msra.mxu0 0.0
  %1060 = vmatprep.subr.mxu0 0.0
  %1061 = vmatpush2.msra.mxu0 0.0
  %1062 = vmatprep.subr.mxu0 0.0
  %1063 = vmatpush2.msra.mxu0 0.0
  %1064 = vmatprep.subr.mxu0 0.0
  %1065 = vmatpush2.msra.mxu0 0.0
  %1066 = vmatprep.subr.mxu0 0.0
  %1067 = vmatpush2.msra.mxu0 0.0
  %1068 = vmatprep.subr.mxu0 0.0
  %1069 = vmatpush2.msra.mxu0 0.0
  %1070 = vmatprep.subr.mxu0 0.0
  %1071 = vmatpush2.msra.mxu0 0.0
  %1072 = vmatprep.subr.mxu0 0.0
  %1073 = vmatpush2.msra.mxu0 0.0
  %1074 = vmatprep.subr.mxu0 0.0
  %1075 = vmatpush2.msra.mxu0 0.0
  %1076 = vmatprep.subr.mxu0 0.0
  %1077 = vmatpush2.msra.mxu0 0.0
  %1078 = vmatprep.subr.mxu0 0.0
  %1079 = vmatpush2.msra.mxu0 0.0
  %1080 = vmatprep.subr.mxu0 0.0
  %1081 = vmatpush2.msra.mxu0 0.0
  %1082 = vmatprep.mubr.f32.mxu0 0.0
  %1083 = vmatmul.mubr.f32.gmra.mxu0 %v952
  %v1084 = vpop.f32.mrf.mxu0
  %v1085 = vadd.f32 %v1006, %v1084
  %v1086 = vpop.f32.mrf.mxu0
  %v1087 = vadd.f32 %v1010, %v1086
  %1088 = vdwg.mxu0
  %1089 = vmatprep.subr.mxu0 0.0
  %1090 = vmatpush1.msra.mxu0 %v1000
  %1091 = vmatprep.subr.mxu0 0.0
  %1092 = vmatpush1.msra.mxu0 %v997
  %1093 = vmatprep.subr.mxu0 0.0
  %1094 = vmatpush1.msra.mxu0 %v994
  %1095 = vmatprep.subr.mxu0 0.0
  %1096 = vmatpush1.msra.mxu0 %v991
  %1097 = vmatprep.subr.mxu0 0.0
  %1098 = vmatpush1.msra.mxu0 %v988
  %1099 = vmatprep.subr.mxu0 0.0
  %1100 = vmatpush1.msra.mxu0 %v985
  %1101 = vmatprep.subr.mxu0 0.0
  %1102 = vmatpush1.msra.mxu0 %v982
  %1103 = vmatprep.subr.mxu0 0.0
  %1104 = vmatpush1.msra.mxu0 %v979
  %1105 = vmatprep.subr.mxu0 0.0
  %1106 = vmatpush1.msra.mxu0 %v976
  %1107 = vmatprep.subr.mxu0 0.0
  %1108 = vmatpush1.msra.mxu0 %v973
  %1109 = vmatprep.subr.mxu0 0.0
  %1110 = vmatpush1.msra.mxu0 %v970
  %1111 = vmatprep.subr.mxu0 0.0
  %1112 = vmatpush1.msra.mxu0 %v967
  %1113 = vmatprep.subr.mxu0 0.0
  %1114 = vmatpush1.msra.mxu0 %v964
  %1115 = vmatprep.subr.mxu0 0.0
  %1116 = vmatpush1.msra.mxu0 %v961
  %1117 = vmatprep.subr.mxu0 0.0
  %1118 = vmatpush1.msra.mxu0 %v958
  %1119 = vmatprep.subr.mxu0 0.0
  %1120 = vmatpush1.msra.mxu0 %v955
  %1121 = vmatprep.subr.mxu0 0.0
  %1122 = vmatpush2.msra.mxu0 0.0
  %1123 = vmatprep.subr.mxu0 0.0
  %1124 = vmatpush2.msra.mxu0 0.0
  %1125 = vmatprep.subr.mxu0 0.0
  %1126 = vmatpush2.msra.mxu0 0.0
  %1127 = vmatprep.subr.mxu0 0.0
  %1128 = vmatpush2.msra.mxu0 0.0
  %1129 = vmatprep.subr.mxu0 0.0
  %1130 = vmatpush2.msra.mxu0 0.0
  %1131 = vmatprep.subr.mxu0 0.0
  %1132 = vmatpush2.msra.mxu0 0.0
  %1133 = vmatprep.subr.mxu0 0.0
  %1134 = vmatpush2.msra.mxu0 0.0
  %1135 = vmatprep.subr.mxu0 0.0
  %1136 = vmatpush2.msra.mxu0 0.0
  %1137 = vmatprep.subr.mxu0 0.0
  %1138 = vmatpush2.msra.mxu0 0.0
  %1139 = vmatprep.subr.mxu0 0.0
  %1140 = vmatpush2.msra.mxu0 0.0
  %1141 = vmatprep.subr.mxu0 0.0
  %1142 = vmatpush2.msra.mxu0 0.0
  %1143 = vmatprep.subr.mxu0 0.0
  %1144 = vmatpush2.msra.mxu0 0.0
  %1145 = vmatprep.subr.mxu0 0.0
  %1146 = vmatpush2.msra.mxu0 0.0
  %1147 = vmatprep.subr.mxu0 0.0
  %1148 = vmatpush2.msra.mxu0 0.0
  %1149 = vmatprep.subr.mxu0 0.0
  %1150 = vmatpush2.msra.mxu0 0.0
  %1151 = vmatprep.subr.mxu0 0.0
  %1152 = vmatpush2.msra.mxu0 0.0
  %1153 = vmatprep.mubr.f32.mxu0 0.0
  %1154 = vmatmul.mubr.f32.gmra.mxu0 %v952
  %v1155 = vpop.f32.mrf.mxu0
  %v1156 = vadd.f32 %v1014, %v1155
  %v1157 = vpop.f32.mrf.mxu0
  %1158 = vdwg.mxu0
  %vm1159 = vcmask 1041408
  %v1160 = vsel %vm1159, %v1085, -inf
  %v1161 = vsel %vm1159, %v1087, -inf
  %v1162 = vsel %vm1159, %v1156, -inf
  %v1163 = vmax.f32 %v1160, %v1161
  %v1164 = vmax.f32 %v1163, %v1162
  %1165 = vmax.xlane.f32.xlu0 %v1164
  %v1166 = vpop.xlane.xlu0 %1165
  %v1167 = vsub.f32 %v1085, %v1166
  %v1168 = vsub.f32 %v1087, %v1166
  %v1169 = vsub.f32 %v1156, %v1166
  %v1170 = vmul.f32 %v1167, 1.442695
  %v1171 = vpow.pop %v1170
  %v1172 = vmul.f32 %v1168, 1.442695
  %v1173 = vpow.pop %v1172
  %v1174 = vmul.f32 %v1169, 1.442695
  %v1175 = vpow.pop %v1174
  %v1176 = vld [vmem:[%s9] sm:$0xff]
  %v1177 = vld [vmem:[%s9 + $0x8] sm:$0xff]
  %v1178 = vld [vmem:[%s9 + $0x10] sm:$0xff]
  %v1179 = vld [vmem:[%s9 + $0x18] sm:$0xff]
  %v1180 = vld [vmem:[%s9 + $0x20] sm:$0xff]
  %v1181 = vld [vmem:[%s9 + $0x28] sm:$0xff]
  %v1182 = vld [vmem:[%s9 + $0x30] sm:$0xff]
  %v1183 = vld [vmem:[%s9 + $0x38] sm:$0xff]
  %v1184 = vld [vmem:[%s9 + $0x40] sm:$0xff]
  %v1185 = vld [vmem:[%s9 + $0x48] sm:$0xff]
  %v1186 = vld [vmem:[%s9 + $0x50] sm:$0xff]
  %v1187 = vld [vmem:[%s9 + $0x58] sm:$0xff]
  %v1188 = vld [vmem:[%s9 + $0x60] sm:$0xff]
  %v1189 = vld [vmem:[%s9 + $0x68] sm:$0xff]
  %v1190 = vld [vmem:[%s9 + $0x70] sm:$0xff]
  %v1191 = vld [vmem:[%s9 + $0x78] sm:$0xff]
  %v1192 = vld [vmem:[%s9 + $0x80] sm:$0xff]
  %v1193 = vld [vmem:[%s9 + $0x88] sm:$0xff]
  %v1194 = vld [vmem:[%s9 + $0x90] sm:$0xff]
  %v1195 = vld [vmem:[%s9 + $0x98] sm:$0xff]
  %v1196 = vld [vmem:[%s9 + $0xa0] sm:$0xff]
  %v1197 = vld [vmem:[%s9 + $0xa8] sm:$0xff]
  %v1198 = vld [vmem:[%s9 + $0xb0] sm:$0xff]
  %v1199 = vld [vmem:[%s9 + $0xb8] sm:$0xff]
  %v1200 = vld [vmem:[%s9 + $0xc0] sm:$0xff]
  %v1201 = vld [vmem:[%s9 + $0xc8] sm:$0xff]
  %v1202 = vld [vmem:[%s9 + $0xd0] sm:$0xff]
  %v1203 = vld [vmem:[%s9 + $0xd8] sm:$0xff]
  %v1204 = vld [vmem:[%s9 + $0xe0] sm:$0xff]
  %v1205 = vld [vmem:[%s9 + $0xe8] sm:$0xff]
  %v1206 = vld [vmem:[%s9 + $0xf0] sm:$0xff]
  %v1207 = vld [vmem:[%s9 + $0xf8] sm:$0xff]
  %v1208 = vld [vmem:[%s9 + $0x100] sm:$0xff]
  %v1209 = vld [vmem:[%s9 + $0x108] sm:$0xff]
  %v1210 = vld [vmem:[%s9 + $0x110] sm:$0xff]
  %v1211 = vld [vmem:[%s9 + $0x118] sm:$0xff]
  %v1212 = vld [vmem:[%s9 + $0x120] sm:$0xff]
  %v1213 = vld [vmem:[%s9 + $0x128] sm:$0xff]
  %v1214 = vld [vmem:[%s9 + $0x130] sm:$0xff]
  %v1215 = vld [vmem:[%s9 + $0x138] sm:$0xff]
  %v1216 = vld [vmem:[%s9 + $0x140] sm:$0xff]
  %v1217 = vld [vmem:[%s9 + $0x148] sm:$0xff]
  %v1218 = vld [vmem:[%s9 + $0x150] sm:$0xff]
  %v1219 = vld [vmem:[%s9 + $0x158] sm:$0xff]
  %v1220 = vld [vmem:[%s9 + $0x160] sm:$0xff]
  %v1221 = vld [vmem:[%s9 + $0x168] sm:$0xff]
  %v1222 = vld [vmem:[%s9 + $0x170] sm:$0xff]
  %v1223 = vld [vmem:[%s9 + $0x178] sm:$0xff]
  %v1224 = vld [vmem:[%s9 + $0x180] sm:$0xff]
  %v1225 = vld [vmem:[%s9 + $0x188] sm:$0xff]
  %v1226 = vld [vmem:[%s9 + $0x190] sm:$0xff]
  %v1227 = vld [vmem:[%s9 + $0x198] sm:$0xff]
  %v1228 = vld [vmem:[%s9 + $0x1a0] sm:$0xff]
  %v1229 = vld [vmem:[%s9 + $0x1a8] sm:$0xff]
  %v1230 = vld [vmem:[%s9 + $0x1b0] sm:$0xff]
  %v1231 = vld [vmem:[%s9 + $0x1b8] sm:$0xff]
  %v1232 = vld [vmem:[%s9 + $0x1c0] sm:$0xff]
  %v1233 = vld [vmem:[%s9 + $0x1c8] sm:$0xff]
  %v1234 = vld [vmem:[%s9 + $0x1d0] sm:$0xff]
  %v1235 = vld [vmem:[%s9 + $0x1d8] sm:$0xff]
  %v1236 = vld [vmem:[%s9 + $0x1e0] sm:$0xff]
  %v1237 = vld [vmem:[%s9 + $0x1e8] sm:$0xff]
  %v1238 = vld [vmem:[%s9 + $0x1f0] sm:$0xff]
  %v1239 = vld [vmem:[%s9 + $0x1f8] sm:$0xff]
  %v1240 = vld [vmem:[%s9 + $0x200] sm:$0xff]
  %v1241 = vld [vmem:[%s9 + $0x208] sm:$0xff]
  %v1242 = vld [vmem:[%s9 + $0x210] sm:$0xff]
  %v1243 = vld [vmem:[%s9 + $0x218] sm:$0xff]
  %v1244 = vld [vmem:[%s9 + $0x220] sm:$0xff]
  %v1245 = vld [vmem:[%s9 + $0x228] sm:$0xff]
  %v1246 = vld [vmem:[%s9 + $0x230] sm:$0xff]
  %v1247 = vld [vmem:[%s9 + $0x238] sm:$0xff]
  %v1248 = vld [vmem:[%s9 + $0x240] sm:$0xff]
  %v1249 = vld [vmem:[%s9 + $0x248] sm:$0xff]
  %v1250 = vld [vmem:[%s9 + $0x250] sm:$0xff]
  %v1251 = vld [vmem:[%s9 + $0x258] sm:$0xff]
  %v1252 = vld [vmem:[%s9 + $0x260] sm:$0xff]
  %v1253 = vld [vmem:[%s9 + $0x268] sm:$0xff]
  %v1254 = vld [vmem:[%s9 + $0x270] sm:$0xff]
  %v1255 = vld [vmem:[%s9 + $0x278] sm:$0xff]
  %v1256 = vld [vmem:[%s9 + $0x280] sm:$0xff]
  %v1257 = vld [vmem:[%s9 + $0x288] sm:$0xff]
  %v1258 = vld [vmem:[%s9 + $0x290] sm:$0xff]
  %v1259 = vld [vmem:[%s9 + $0x298] sm:$0xff]
  %v1260 = vld [vmem:[%s9 + $0x2a0] sm:$0xff]
  %v1261 = vld [vmem:[%s9 + $0x2a8] sm:$0xff]
  %v1262 = vld [vmem:[%s9 + $0x2b0] sm:$0xff]
  %v1263 = vld [vmem:[%s9 + $0x2b8] sm:$0xff]
  %v1264 = vld [vmem:[%s9 + $0x2c0] sm:$0xff]
  %v1265 = vld [vmem:[%s9 + $0x2c8] sm:$0xff]
  %v1266 = vld [vmem:[%s9 + $0x2d0] sm:$0xff]
  %v1267 = vld [vmem:[%s9 + $0x2d8] sm:$0xff]
  %v1268 = vld [vmem:[%s9 + $0x2e0] sm:$0xff]
  %v1269 = vld [vmem:[%s9 + $0x2e8] sm:$0xff]
  %v1270 = vld [vmem:[%s9 + $0x2f0] sm:$0xff]
  %v1271 = vld [vmem:[%s9 + $0x2f8] sm:$0xff]
  %v1272 = vld [vmem:[%s9 + $0x300] sm:$0xff]
  %v1273 = vld [vmem:[%s9 + $0x308] sm:$0xff]
  %v1274 = vld [vmem:[%s9 + $0x310] sm:$0xff]
  %v1275 = vld [vmem:[%s9 + $0x318] sm:$0xff]
  %v1276 = vld [vmem:[%s9 + $0x320] sm:$0xff]
  %v1277 = vld [vmem:[%s9 + $0x328] sm:$0xff]
  %v1278 = vld [vmem:[%s9 + $0x330] sm:$0xff]
  %v1279 = vld [vmem:[%s9 + $0x338] sm:$0xff]
  %v1280 = vld [vmem:[%s9 + $0x340] sm:$0xff]
  %v1281 = vld [vmem:[%s9 + $0x348] sm:$0xff]
  %v1282 = vld [vmem:[%s9 + $0x350] sm:$0xff]
  %v1283 = vld [vmem:[%s9 + $0x358] sm:$0xff]
  %v1284 = vld [vmem:[%s9 + $0x360] sm:$0xff]
  %v1285 = vld [vmem:[%s9 + $0x368] sm:$0xff]
  %v1286 = vld [vmem:[%s9 + $0x370] sm:$0xff]
  %v1287 = vld [vmem:[%s9 + $0x378] sm:$0xff]
  %v1288 = vld [vmem:[%s9 + $0x380] sm:$0xff]
  %v1289 = vld [vmem:[%s9 + $0x388] sm:$0xff]
  %v1290 = vld [vmem:[%s9 + $0x390] sm:$0xff]
  %v1291 = vld [vmem:[%s9 + $0x398] sm:$0xff]
  %v1292 = vld [vmem:[%s9 + $0x3a0] sm:$0xff]
  %v1293 = vld [vmem:[%s9 + $0x3a8] sm:$0xff]
  %v1294 = vld [vmem:[%s9 + $0x3b0] sm:$0xff]
  %v1295 = vld [vmem:[%s9 + $0x3b8] sm:$0xff]
  %v1296 = vld [vmem:[%s9 + $0x3c0] sm:$0xff]
  %v1297 = vld [vmem:[%s9 + $0x3c8] sm:$0xff]
  %v1298 = vld [vmem:[%s9 + $0x3d0] sm:$0xff]
  %v1299 = vld [vmem:[%s9 + $0x3d8] sm:$0xff]
  %v1300 = vld [vmem:[%s9 + $0x3e0] sm:$0xff]
  %v1301 = vld [vmem:[%s9 + $0x3e8] sm:$0xff]
  %v1302 = vld [vmem:[%s9 + $0x3f0] sm:$0xff]
  %v1303 = vld [vmem:[%s9 + $0x3f8] sm:$0xff]
  %v1304 = vld [vmem:[%s9 + $0x400] sm:$0xff]
  %v1305 = vld [vmem:[%s9 + $0x408] sm:$0xff]
  %v1306 = vld [vmem:[%s9 + $0x410] sm:$0xff]
  %v1307 = vld [vmem:[%s9 + $0x418] sm:$0xff]
  %v1308 = vld [vmem:[%s9 + $0x420] sm:$0xff]
  %v1309 = vld [vmem:[%s9 + $0x428] sm:$0xff]
  %v1310 = vld [vmem:[%s9 + $0x430] sm:$0xff]
  %v1311 = vld [vmem:[%s9 + $0x438] sm:$0xff]
  %v1312 = vld [vmem:[%s9 + $0x440] sm:$0xff]
  %v1313 = vld [vmem:[%s9 + $0x448] sm:$0xff]
  %v1314 = vld [vmem:[%s9 + $0x450] sm:$0xff]
  %v1315 = vld [vmem:[%s9 + $0x458] sm:$0xff]
  %v1316 = vld [vmem:[%s9 + $0x460] sm:$0xff]
  %v1317 = vld [vmem:[%s9 + $0x468] sm:$0xff]
  %v1318 = vld [vmem:[%s9 + $0x470] sm:$0xff]
  %v1319 = vld [vmem:[%s9 + $0x478] sm:$0xff]
  %1320 = vmatprep.subr.mxu0 %v1222
  %1321 = vmatpush1.msra.mxu0 %v1221
  %1322 = vmatprep.subr.mxu0 %v1219
  %1323 = vmatpush1.msra.mxu0 %v1218
  %1324 = vmatprep.subr.mxu0 %v1216
  %1325 = vmatpush1.msra.mxu0 %v1215
  %1326 = vmatprep.subr.mxu0 %v1213
  %1327 = vmatpush1.msra.mxu0 %v1212
  %1328 = vmatprep.subr.mxu0 %v1210
  %1329 = vmatpush1.msra.mxu0 %v1209
  %1330 = vmatprep.subr.mxu0 %v1207
  %1331 = vmatpush1.msra.mxu0 %v1206
  %1332 = vmatprep.subr.mxu0 %v1204
  %1333 = vmatpush1.msra.mxu0 %v1203
  %1334 = vmatprep.subr.mxu0 %v1201
  %1335 = vmatpush1.msra.mxu0 %v1200
  %1336 = vmatprep.subr.mxu0 %v1198
  %1337 = vmatpush1.msra.mxu0 %v1197
  %1338 = vmatprep.subr.mxu0 %v1195
  %1339 = vmatpush1.msra.mxu0 %v1194
  %1340 = vmatprep.subr.mxu0 %v1192
  %1341 = vmatpush1.msra.mxu0 %v1191
  %1342 = vmatprep.subr.mxu0 %v1189
  %1343 = vmatpush1.msra.mxu0 %v1188
  %1344 = vmatprep.subr.mxu0 %v1186
  %1345 = vmatpush1.msra.mxu0 %v1185
  %1346 = vmatprep.subr.mxu0 %v1183
  %1347 = vmatpush1.msra.mxu0 %v1182
  %1348 = vmatprep.subr.mxu0 %v1180
  %1349 = vmatpush1.msra.mxu0 %v1179
  %1350 = vmatprep.subr.mxu0 %v1177
  %1351 = vmatpush1.msra.mxu0 %v1176
  %1352 = vmatprep.subr.mxu0 %v1270
  %1353 = vmatpush2.msra.mxu0 %v1269
  %1354 = vmatprep.subr.mxu0 %v1267
  %1355 = vmatpush2.msra.mxu0 %v1266
  %1356 = vmatprep.subr.mxu0 %v1264
  %1357 = vmatpush2.msra.mxu0 %v1263
  %1358 = vmatprep.subr.mxu0 %v1261
  %1359 = vmatpush2.msra.mxu0 %v1260
  %1360 = vmatprep.subr.mxu0 %v1258
  %1361 = vmatpush2.msra.mxu0 %v1257
  %1362 = vmatprep.subr.mxu0 %v1255
  %1363 = vmatpush2.msra.mxu0 %v1254
  %1364 = vmatprep.subr.mxu0 %v1252
  %1365 = vmatpush2.msra.mxu0 %v1251
  %1366 = vmatprep.subr.mxu0 %v1249
  %1367 = vmatpush2.msra.mxu0 %v1248
  %1368 = vmatprep.subr.mxu0 %v1246
  %1369 = vmatpush2.msra.mxu0 %v1245
  %1370 = vmatprep.subr.mxu0 %v1243
  %1371 = vmatpush2.msra.mxu0 %v1242
  %1372 = vmatprep.subr.mxu0 %v1240
  %1373 = vmatpush2.msra.mxu0 %v1239
  %1374 = vmatprep.subr.mxu0 %v1237
  %1375 = vmatpush2.msra.mxu0 %v1236
  %1376 = vmatprep.subr.mxu0 %v1234
  %1377 = vmatpush2.msra.mxu0 %v1233
  %1378 = vmatprep.subr.mxu0 %v1231
  %1379 = vmatpush2.msra.mxu0 %v1230
  %1380 = vmatprep.subr.mxu0 %v1228
  %1381 = vmatpush2.msra.mxu0 %v1227
  %1382 = vmatprep.subr.mxu0 %v1225
  %1383 = vmatpush2.msra.mxu0 %v1224
  %1384 = vmatprep.mubr.f32.mxu0 %v1173
  %1385 = vmatmul.mubr.f32.gmra.mxu0 %v1171
  %v1386 = vpop.f32.mrf.mxu0
  %v1387 = vadd.f32 0.0, %v1386
  %v1388 = vpop.f32.mrf.mxu0
  %v1389 = vadd.f32 0.0, %v1388
  %1390 = vdwg.mxu0
  %1391 = vmatprep.subr.mxu0 %v1318
  %1392 = vmatpush1.msra.mxu0 %v1317
  %1393 = vmatprep.subr.mxu0 %v1315
  %1394 = vmatpush1.msra.mxu0 %v1314
  %1395 = vmatprep.subr.mxu0 %v1312
  %1396 = vmatpush1.msra.mxu0 %v1311
  %1397 = vmatprep.subr.mxu0 %v1309
  %1398 = vmatpush1.msra.mxu0 %v1308
  %1399 = vmatprep.subr.mxu0 %v1306
  %1400 = vmatpush1.msra.mxu0 %v1305
  %1401 = vmatprep.subr.mxu0 %v1303
  %1402 = vmatpush1.msra.mxu0 %v1302
  %1403 = vmatprep.subr.mxu0 %v1300
  %1404 = vmatpush1.msra.mxu0 %v1299
  %1405 = vmatprep.subr.mxu0 %v1297
  %1406 = vmatpush1.msra.mxu0 %v1296
  %1407 = vmatprep.subr.mxu0 %v1294
  %1408 = vmatpush1.msra.mxu0 %v1293
  %1409 = vmatprep.subr.mxu0 %v1291
  %1410 = vmatpush1.msra.mxu0 %v1290
  %1411 = vmatprep.subr.mxu0 %v1288
  %1412 = vmatpush1.msra.mxu0 %v1287
  %1413 = vmatprep.subr.mxu0 %v1285
  %1414 = vmatpush1.msra.mxu0 %v1284
  %1415 = vmatprep.subr.mxu0 %v1282
  %1416 = vmatpush1.msra.mxu0 %v1281
  %1417 = vmatprep.subr.mxu0 %v1279
  %1418 = vmatpush1.msra.mxu0 %v1278
  %1419 = vmatprep.subr.mxu0 %v1276
  %1420 = vmatpush1.msra.mxu0 %v1275
  %1421 = vmatprep.subr.mxu0 %v1273
  %1422 = vmatpush1.msra.mxu0 %v1272
  %1423 = vmatprep.subr.mxu0 0.0
  %1424 = vmatpush2.msra.mxu0 0.0
  %1425 = vmatprep.subr.mxu0 0.0
  %1426 = vmatpush2.msra.mxu0 0.0
  %1427 = vmatprep.subr.mxu0 0.0
  %1428 = vmatpush2.msra.mxu0 0.0
  %1429 = vmatprep.subr.mxu0 0.0
  %1430 = vmatpush2.msra.mxu0 0.0
  %1431 = vmatprep.subr.mxu0 0.0
  %1432 = vmatpush2.msra.mxu0 0.0
  %1433 = vmatprep.subr.mxu0 0.0
  %1434 = vmatpush2.msra.mxu0 0.0
  %1435 = vmatprep.subr.mxu0 0.0
  %1436 = vmatpush2.msra.mxu0 0.0
  %1437 = vmatprep.subr.mxu0 0.0
  %1438 = vmatpush2.msra.mxu0 0.0
  %1439 = vmatprep.subr.mxu0 0.0
  %1440 = vmatpush2.msra.mxu0 0.0
  %1441 = vmatprep.subr.mxu0 0.0
  %1442 = vmatpush2.msra.mxu0 0.0
  %1443 = vmatprep.subr.mxu0 0.0
  %1444 = vmatpush2.msra.mxu0 0.0
  %1445 = vmatprep.subr.mxu0 0.0
  %1446 = vmatpush2.msra.mxu0 0.0
  %1447 = vmatprep.subr.mxu0 0.0
  %1448 = vmatpush2.msra.mxu0 0.0
  %1449 = vmatprep.subr.mxu0 0.0
  %1450 = vmatpush2.msra.mxu0 0.0
  %1451 = vmatprep.subr.mxu0 0.0
  %1452 = vmatpush2.msra.mxu0 0.0
  %1453 = vmatprep.subr.mxu0 0.0
  %1454 = vmatpush2.msra.mxu0 0.0
  %1455 = vmatprep.mubr.f32.mxu0 0.0
  %1456 = vmatmul.mubr.f32.gmra.mxu0 %v1175
  %v1457 = vpop.f32.mrf.mxu0
  %v1458 = vadd.f32 %v1387, %v1457
  %v1459 = vpop.f32.mrf.mxu0
  %v1460 = vadd.f32 %v1389, %v1459
  %1461 = vdwg.mxu0
  %1462 = vmatprep.subr.mxu0 0.0
  %1463 = vmatpush1.msra.mxu0 %v1223
  %1464 = vmatprep.subr.mxu0 0.0
  %1465 = vmatpush1.msra.mxu0 %v1220
  %1466 = vmatprep.subr.mxu0 0.0
  %1467 = vmatpush1.msra.mxu0 %v1217
  %1468 = vmatprep.subr.mxu0 0.0
  %1469 = vmatpush1.msra.mxu0 %v1214
  %1470 = vmatprep.subr.mxu0 0.0
  %1471 = vmatpush1.msra.mxu0 %v1211
  %1472 = vmatprep.subr.mxu0 0.0
  %1473 = vmatpush1.msra.mxu0 %v1208
  %1474 = vmatprep.subr.mxu0 0.0
  %1475 = vmatpush1.msra.mxu0 %v1205
  %1476 = vmatprep.subr.mxu0 0.0
  %1477 = vmatpush1.msra.mxu0 %v1202
  %1478 = vmatprep.subr.mxu0 0.0
  %1479 = vmatpush1.msra.mxu0 %v1199
  %1480 = vmatprep.subr.mxu0 0.0
  %1481 = vmatpush1.msra.mxu0 %v1196
  %1482 = vmatprep.subr.mxu0 0.0
  %1483 = vmatpush1.msra.mxu0 %v1193
  %1484 = vmatprep.subr.mxu0 0.0
  %1485 = vmatpush1.msra.mxu0 %v1190
  %1486 = vmatprep.subr.mxu0 0.0
  %1487 = vmatpush1.msra.mxu0 %v1187
  %1488 = vmatprep.subr.mxu0 0.0
  %1489 = vmatpush1.msra.mxu0 %v1184
  %1490 = vmatprep.subr.mxu0 0.0
  %1491 = vmatpush1.msra.mxu0 %v1181
  %1492 = vmatprep.subr.mxu0 0.0
  %1493 = vmatpush1.msra.mxu0 %v1178
  %1494 = vmatprep.subr.mxu0 0.0
  %1495 = vmatpush2.msra.mxu0 %v1271
  %1496 = vmatprep.subr.mxu0 0.0
  %1497 = vmatpush2.msra.mxu0 %v1268
  %1498 = vmatprep.subr.mxu0 0.0
  %1499 = vmatpush2.msra.mxu0 %v1265
  %1500 = vmatprep.subr.mxu0 0.0
  %1501 = vmatpush2.msra.mxu0 %v1262
  %1502 = vmatprep.subr.mxu0 0.0
  %1503 = vmatpush2.msra.mxu0 %v1259
  %1504 = vmatprep.subr.mxu0 0.0
  %1505 = vmatpush2.msra.mxu0 %v1256
  %1506 = vmatprep.subr.mxu0 0.0
  %1507 = vmatpush2.msra.mxu0 %v1253
  %1508 = vmatprep.subr.mxu0 0.0
  %1509 = vmatpush2.msra.mxu0 %v1250
  %1510 = vmatprep.subr.mxu0 0.0
  %1511 = vmatpush2.msra.mxu0 %v1247
  %1512 = vmatprep.subr.mxu0 0.0
  %1513 = vmatpush2.msra.mxu0 %v1244
  %1514 = vmatprep.subr.mxu0 0.0
  %1515 = vmatpush2.msra.mxu0 %v1241
  %1516 = vmatprep.subr.mxu0 0.0
  %1517 = vmatpush2.msra.mxu0 %v1238
  %1518 = vmatprep.subr.mxu0 0.0
  %1519 = vmatpush2.msra.mxu0 %v1235
  %1520 = vmatprep.subr.mxu0 0.0
  %1521 = vmatpush2.msra.mxu0 %v1232
  %1522 = vmatprep.subr.mxu0 0.0
  %1523 = vmatpush2.msra.mxu0 %v1229
  %1524 = vmatprep.subr.mxu0 0.0
  %1525 = vmatpush2.msra.mxu0 %v1226
  %1526 = vmatprep.mubr.f32.mxu0 %v1173
  %1527 = vmatmul.mubr.f32.gmra.mxu0 %v1171
  %v1528 = vpop.f32.mrf.mxu0
  %v1529 = vadd.f32 0.0, %v1528
  %v1530 = vpop.f32.mrf.mxu0
  %1531 = vdwg.mxu0
  %1532 = vmatprep.subr.mxu0 0.0
  %1533 = vmatpush1.msra.mxu0 %v1319
  %1534 = vmatprep.subr.mxu0 0.0
  %1535 = vmatpush1.msra.mxu0 %v1316
  %1536 = vmatprep.subr.mxu0 0.0
  %1537 = vmatpush1.msra.mxu0 %v1313
  %1538 = vmatprep.subr.mxu0 0.0
  %1539 = vmatpush1.msra.mxu0 %v1310
  %1540 = vmatprep.subr.mxu0 0.0
  %1541 = vmatpush1.msra.mxu0 %v1307
  %1542 = vmatprep.subr.mxu0 0.0
  %1543 = vmatpush1.msra.mxu0 %v1304
  %1544 = vmatprep.subr.mxu0 0.0
  %1545 = vmatpush1.msra.mxu0 %v1301
  %1546 = vmatprep.subr.mxu0 0.0
  %1547 = vmatpush1.msra.mxu0 %v1298
  %1548 = vmatprep.subr.mxu0 0.0
  %1549 = vmatpush1.msra.mxu0 %v1295
  %1550 = vmatprep.subr.mxu0 0.0
  %1551 = vmatpush1.msra.mxu0 %v1292
  %1552 = vmatprep.subr.mxu0 0.0
  %1553 = vmatpush1.msra.mxu0 %v1289
  %1554 = vmatprep.subr.mxu0 0.0
  %1555 = vmatpush1.msra.mxu0 %v1286
  %1556 = vmatprep.subr.mxu0 0.0
  %1557 = vmatpush1.msra.mxu0 %v1283
  %1558 = vmatprep.subr.mxu0 0.0
  %1559 = vmatpush1.msra.mxu0 %v1280
  %1560 = vmatprep.subr.mxu0 0.0
  %1561 = vmatpush1.msra.mxu0 %v1277
  %1562 = vmatprep.subr.mxu0 0.0
  %1563 = vmatpush1.msra.mxu0 %v1274
  %1564 = vmatprep.subr.mxu0 0.0
  %1565 = vmatpush2.msra.mxu0 0.0
  %1566 = vmatprep.subr.mxu0 0.0
  %1567 = vmatpush2.msra.mxu0 0.0
  %1568 = vmatprep.subr.mxu0 0.0
  %1569 = vmatpush2.msra.mxu0 0.0
  %1570 = vmatprep.subr.mxu0 0.0
  %1571 = vmatpush2.msra.mxu0 0.0
  %1572 = vmatprep.subr.mxu0 0.0
  %1573 = vmatpush2.msra.mxu0 0.0
  %1574 = vmatprep.subr.mxu0 0.0
  %1575 = vmatpush2.msra.mxu0 0.0
  %1576 = vmatprep.subr.mxu0 0.0
  %1577 = vmatpush2.msra.mxu0 0.0
  %1578 = vmatprep.subr.mxu0 0.0
  %1579 = vmatpush2.msra.mxu0 0.0
  %1580 = vmatprep.subr.mxu0 0.0
  %1581 = vmatpush2.msra.mxu0 0.0
  %1582 = vmatprep.subr.mxu0 0.0
  %1583 = vmatpush2.msra.mxu0 0.0
  %1584 = vmatprep.subr.mxu0 0.0
  %1585 = vmatpush2.msra.mxu0 0.0
  %1586 = vmatprep.subr.mxu0 0.0
  %1587 = vmatpush2.msra.mxu0 0.0
  %1588 = vmatprep.subr.mxu0 0.0
  %1589 = vmatpush2.msra.mxu0 0.0
  %1590 = vmatprep.subr.mxu0 0.0
  %1591 = vmatpush2.msra.mxu0 0.0
  %1592 = vmatprep.subr.mxu0 0.0
  %1593 = vmatpush2.msra.mxu0 0.0
  %1594 = vmatprep.subr.mxu0 0.0
  %1595 = vmatpush2.msra.mxu0 0.0
  %1596 = vmatprep.mubr.f32.mxu0 0.0
  %1597 = vmatmul.mubr.f32.gmra.mxu0 %v1175
  %v1598 = vpop.f32.mrf.mxu0
  %v1599 = vadd.f32 %v1529, %v1598
  %v1600 = vpop.f32.mrf.mxu0
  %1601 = vdwg.mxu0
  %v1602 = vrcp.pop %v1458
  %v1603 = vrcp.pop %v1460
  %v1604 = vrcp.pop %v1599
  %v1605 = vmul.f32 %v1171, %v1602
  %v1606 = vmul.f32 %v1173, %v1603
  %v1607 = vmul.f32 %v1175, %v1604
  %v1611 = vcombine.low %v1605, %v1606
  %v1613 = vunpack.c.l.s4 1983009808
  %v1614 = vunpack.c.0.s8 %v1613
  %v1615 = vlaneseq
  %v1616 = vshrl.u32 %v1615, 7
  %v1617 = vsub.s32 %v1614, %v1616
  %v1618 = vrot.slane %v1611, %v1617
  %v1620 = vunpack.c.l.s4 1983009808
  %v1621 = vunpack.c.0.s8 %v1620
  %v1622 = vlaneseq
  %v1623 = vshrl.u32 %v1622, 7
  %v1624 = vsub.s32 %v1621, %v1623
  %v1625 = vrot.slane %v1607, %v1624
  %v1626 = vcombine.low %v1618, %v1625
  %1628 = vst [vmem:[%s10] sm:$0x3f] %v1626
  // Predicated region
  $region42: #{dqn_forward.1} parent=0 // pred_check
    _
  $region43: #{dqn_forward.1} parent=0 // pred_check_branch
    %1630 = sbr.rel (0) target = $region45
  $region44: #{dqn_forward.1} parent=0 // pred_region
    _
  $region45: #{dqn_forward.1} parent=0 // pred_fallthru
    _
  // Predicated region
  $region46: #{dqn_forward.1} parent=0 // pred_check
    _
  $region47: #{dqn_forward.1} parent=0 // pred_check_branch
    %1632 = sbr.rel (0) target = $region49
  $region48: #{dqn_forward.1} parent=0 // pred_region
    _
  $region49: #{dqn_forward.1} parent=0 // pred_fallthru
    _

</llo_original>
